<compile_context>
chip_gen: v6e
topology: v6e:2x2x1
jax: 0.10.0
libtpu: 0.0.40
codegen_flags: <defaults>
</compile_context>

<pallas_src>
import functools
import math

import jax
import jax.numpy as jnp
from jax import lax
from jax.experimental import pallas as pl
from jax.experimental.pallas import tpu as pltpu

# Finite "-inf": keeps exp/max arithmetic NaN-free even on fully-masked tiles.
_NEG_BIG = -1e30


def _round_up(x, m):
    return (x + m - 1) // m * m


def _pick_tile(requested, n):
    # Lane-aligned tile (multiple of 128), shrunk for tiny problems.  The 512
    # defaults are 256-aligned, which keeps the v6e/v7x 256-wide MXU full.
    cap = _round_up(n, 128)
    return max(128, min(_round_up(int(requested), 128), cap))


def _supcon_kernel(a_ref, bt_ref, rgid_ref, cgid_ref, invc_ref, out_ref,
                   m_ref, l_ref, s_ref, *, n_valid, loss_scale, bm, bn):
    i = pl.program_id(0)
    j = pl.program_id(1)
    nj = pl.num_programs(1)

    @pl.when(j == 0)
    def _init():
        m_ref[...] = jnp.full_like(m_ref, _NEG_BIG)
        l_ref[...] = jnp.zeros_like(l_ref)
        s_ref[...] = jnp.zeros_like(s_ref)

    # Anchors are pre-scaled by 1/temperature and the contrast matrix is
    # pre-transposed in the wrapper, so this is a canonical [bm,d] x [d,bn]
    # MXU matmul (bf16 in, f32 accumulate): no per-tile transpose and no
    # O(bm*bn) in-loop scale.
    scores = lax.dot_general(
        a_ref[...], bt_ref[...],
        dimension_numbers=(((1,), (0,)), ((), ())),
        preferred_element_type=jnp.float32)                        # [bm, bn]

    rg = rgid_ref[...]                                             # [bm, 1]
    cg = cgid_ref[...]                                             # [1, bn]

    row_start = i * bm
    col_start = j * bn
    # Element-wise masking is only needed on tiles that straddle the
    # self-contrast diagonal or contain padding columns (col >= n_valid);
    # interior tiles take a mask-free fast path.
    on_diag = jnp.logical_and(row_start < col_start + bn,
                              col_start < row_start + bm)
    ragged = col_start + bn > n_valid
    needs_mask = jnp.logical_or(on_diag, ragged)

    def _accumulate(logits, p_keep, pos):
        # Online (flash-style) softmax-denominator update + positive-score sum.
        m_prev = m_ref[...]
        m_new = jnp.maximum(m_prev, jnp.max(logits, axis=1, keepdims=True))
        p = jnp.exp(logits - m_new)
        if p_keep is not None:
            # Guards the degenerate all-masked-row case (m_new == _NEG_BIG),
            # where exp(0) == 1 would otherwise inflate l.
            p = jnp.where(p_keep, p, 0.0)
        l_ref[...] = (jnp.exp(m_prev - m_new) * l_ref[...]
                      + jnp.sum(p, axis=1, keepdims=True))
        m_ref[...] = m_new
        s_ref[...] += jnp.sum(jnp.where(pos, scores, 0.0),
                              axis=1, keepdims=True)

    @pl.when(jnp.logical_not(needs_mask))
    def _interior():
        # No diagonal, no padding columns: every entry is a valid contrast.
        _accumulate(scores, None, rg == cg)

    @pl.when(needs_mask)
    def _boundary():
        row_idx = row_start + lax.broadcasted_iota(jnp.int32, (bm, 1), 0)
        col_idx = col_start + lax.broadcasted_iota(jnp.int32, (1, bn), 1)
        logits_mask = (col_idx < n_valid) & (row_idx != col_idx)
        masked = jnp.where(logits_mask, scores, _NEG_BIG)
        _accumulate(masked, logits_mask, (rg == cg) & logits_mask)

    @pl.when(j == nj - 1)
    def _finalize():
        row_idx = row_start + lax.broadcasted_iota(jnp.int32, (bm, 1), 0)
        valid_row = row_idx < n_valid
        log_denom = m_ref[...] + jnp.log(l_ref[...])
        # 1/positive-count was precomputed in the wrapper.  Real anchors with
        # zero positives keep PyTorch's 0/0 -> NaN semantics (invc == inf,
        # s == 0); padding rows are forced to 0.
        mean_log_prob_pos = s_ref[...] * invc_ref[...] - log_denom
        out_ref[...] = jnp.where(valid_row, loss_scale * mean_log_prob_pos, 0.0)


def supcon_loss(features, labels=None, mask=None, *,
                temperature=0.07, contrast_mode='all', base_temperature=0.07,
                block_m=512, block_n=512):
    """JAX/Pallas equivalent of SupConLoss.forward (contrast_mode='all')."""
    if features.ndim < 3:
        raise ValueError('`features` needs to be [bsz, n_views, ...]')
    if features.ndim > 3:
        features = features.reshape(features.shape[0], features.shape[1], -1)
    if contrast_mode != 'all':
        # TODO(synk): contrast_mode='one' (single-anchor) variant not implemented.
        raise NotImplementedError("Only contrast_mode='all' is implemented")

    bsz, n_views, dim = features.shape
    if labels is not None and mask is not None:
        raise ValueError('Cannot define both `labels` and `mask`')
    if mask is not None:
        # TODO(synk): arbitrary (possibly asymmetric) [bsz, bsz] user mask is not
        # representable as per-row group ids; only labels / SimCLR paths here.
        raise NotImplementedError('Explicit `mask` argument is not supported')
    if labels is None:
        gid = jnp.arange(bsz, dtype=jnp.int32)          # SimCLR: mask = eye(bsz)
    else:
        labels = jnp.asarray(labels).reshape(-1)
        if labels.shape[0] != bsz:
            raise ValueError('Num of labels does not match num of features')
        gid = labels.astype(jnp.int32)

    n = n_views * bsz
    inv_temp = 1.0 / float(temperature)
    loss_scale = -(float(temperature) / float(base_temperature))

    # contrast_feature = cat(unbind(features, dim=1), dim=0): view-major rows.
    # Keep the caller's dtype (bf16 recommended) for the MXU; do NOT upcast.
    contrast_feature = jnp.transpose(features, (1, 0, 2)).reshape(n, dim)
    gid_full = jnp.tile(gid, (n_views,))                 # group id per row

    # Positive-pair counts precomputed OUTSIDE the kernel (removes a per-tile
    # reduction + scratch).  Row r: c_r = n_views * |{b: label_b == label_r}| - 1
    # (SimCLR: n_views - 1).  Zero-positive rows -> inf -> NaN (torch 0/0).
    if labels is None:
        c_sample = jnp.full((bsz,), float(n_views - 1), jnp.float32)
    else:
        same = (gid[:, None] == gid[None, :]).astype(jnp.float32)   # bsz x bsz
        c_sample = n_views * jnp.sum(same, axis=1) - 1.0
    inv_c = 1.0 / jnp.tile(c_sample, (n_views,))

    # Fold 1/temperature into the anchor operand once (O(N*D)) instead of an
    # O(N^2) in-loop multiply.  The extra rounding is benign for L2-normalized
    # features (and exact for f32 inputs).
    anchor = (contrast_feature.astype(jnp.float32) * inv_temp).astype(
        contrast_feature.dtype)

    bm = _pick_tile(block_m, n)
    bn = _pick_tile(block_n, n)
    # v7x megacore: keep >=2 row tiles on the "parallel" axis when n allows so
    # both TensorCores get work.
    if _round_up(n, bm) // bm < 2 and bm > 128:
        bm = max(128, _round_up(bm // 2, 128))
    # NOTE: n_valid / tile sizes are baked in, so each distinct batch size
    # triggers a recompile (operational, matches typical training usage).
    n_pad = _round_up(n, math.lcm(bm, bn))
    d_pad = _round_up(dim, 128)

    anchor_pad = jnp.pad(anchor, ((0, n_pad - n), (0, d_pad - dim)))
    contrast_pad = jnp.pad(contrast_feature,
                           ((0, n_pad - n), (0, d_pad - dim)))
    contrast_t = contrast_pad.T                      # (d_pad, n_pad) matmul RHS
    gid_pad = jnp.pad(gid_full, (0, n_pad - n))
    row_gid = gid_pad.reshape(n_pad, 1)
    col_gid = gid_pad.reshape(1, n_pad)
    inv_c_pad = jnp.pad(inv_c, (0, n_pad - n),
                        constant_values=1.0).reshape(n_pad, 1)

    kernel = functools.partial(
        _supcon_kernel, n_valid=n, loss_scale=loss_scale, bm=bm, bn=bn)

    # VMEM budget: double-buffered feature tiles + f32 elementwise temporaries
    # (scores / exp / compares), with headroom, capped below v7x's 64 MiB
    # physical VMEM (also lifts v5e's 16 MiB default scoped limit).
    itemsize = jnp.dtype(contrast_feature.dtype).itemsize
    vmem_est = (2 * (bm + bn) * d_pad * itemsize
                + 8 * bm * bn * 4
                + 32 * (bm + bn)
                + (4 << 20))
    vmem_limit = int(min(max(vmem_est, 32 << 20), 56 << 20))

    contrast_spec = pl.BlockSpec((d_pad, bn), lambda i, j: (0, j))
    if d_pad >= 2048:
        # Deepen prefetch of the large contrast DMA behind the short compute.
        contrast_spec = pl.BlockSpec((d_pad, bn), lambda i, j: (0, j),
                                     pipeline_mode=pl.Buffered(3))

    grid = (n_pad // bm, n_pad // bn)
    per_anchor = pl.pallas_call(
        kernel,
        out_shape=jax.ShapeDtypeStruct((n_pad, 1), jnp.float32),
        grid_spec=pltpu.PrefetchScalarGridSpec(
            num_scalar_prefetch=0,
            grid=grid,
            in_specs=[
                pl.BlockSpec((bm, d_pad), lambda i, j: (i, 0)),  # scaled anchors
                contrast_spec,                                    # contrast^T
                pl.BlockSpec((bm, 1), lambda i, j: (i, 0)),       # row group ids
                pl.BlockSpec((1, bn), lambda i, j: (0, j)),       # col group ids
                pl.BlockSpec((bm, 1), lambda i, j: (i, 0)),       # 1/positive count
            ],
            out_specs=pl.BlockSpec((bm, 1), lambda i, j: (i, 0)),
            scratch_shapes=[pltpu.VMEM((bm, 1), jnp.float32)] * 3),
        compiler_params=pltpu.CompilerParams(
            dimension_semantics=("parallel", "arbitrary"),
            vmem_limit_bytes=vmem_limit),
    )(anchor_pad, contrast_t, row_gid, col_gid, inv_c_pad)

    # loss.view(anchor_count, batch_size).mean() == mean over all N anchors.
    # Padding rows contribute exactly 0.
    return jnp.sum(per_anchor) / n


def _supcon_loss_ref(features, labels=None, *,
                     temperature=0.07, base_temperature=0.07):
    """Pure-JAX reference mirroring the PyTorch code (contrast_mode='all')."""
    features = features.astype(jnp.float32)
    bsz, n_views, dim = features.shape
    if labels is None:
        base_mask = jnp.eye(bsz, dtype=jnp.float32)
    else:
        labels = labels.reshape(-1, 1)
        base_mask = (labels == labels.T).astype(jnp.float32)
    cf = jnp.transpose(features, (1, 0, 2)).reshape(n_views * bsz, dim)
    adc = jnp.matmul(cf, cf.T, precision=lax.Precision.HIGHEST) / temperature
    logits = adc - jnp.max(adc, axis=1, keepdims=True)
    n = n_views * bsz
    logits_mask = 1.0 - jnp.eye(n, dtype=jnp.float32)
    m = jnp.tile(base_mask, (n_views, n_views)) * logits_mask
    exp_logits = jnp.exp(logits) * logits_mask
    log_prob = logits - jnp.log(jnp.sum(exp_logits, axis=1, keepdims=True))
    mean_log_prob_pos = jnp.sum(m * log_prob, axis=1) / jnp.sum(m, axis=1)
    loss = -(temperature / base_temperature) * mean_log_prob_pos
    return jnp.mean(loss)


if __name__ == "__main__":
    key = jax.random.PRNGKey(0)
    k1, k2 = jax.random.split(key)

    bsz, n_views, dim = 4, 2, 32
    feats32 = jax.random.normal(k1, (bsz, n_views, dim), dtype=jnp.float32)
    # L2-normalize along the feature dim (typical SupCon usage).
    feats32 = feats32 / jnp.linalg.norm(feats32, axis=-1, keepdims=True)
    feats16 = feats32.astype(jnp.bfloat16)
    labels = jax.random.randint(k2, (bsz,), 0, 2)

    # --- float32 path (tight tolerance) ---
    loss_unsup32 = supcon_loss(feats32)
    loss_sup32 = supcon_loss(feats32, labels=labels)
    jax.block_until_ready(loss_unsup32)
    jax.block_until_ready(loss_sup32)
    ref_unsup32 = _supcon_loss_ref(feats32)
    ref_sup32 = _supcon_loss_ref(feats32, labels=labels)
    assert jnp.allclose(loss_unsup32, ref_unsup32, rtol=5e-3, atol=5e-3), (
        loss_unsup32, ref_unsup32)
    assert jnp.allclose(loss_sup32, ref_sup32, rtol=5e-3, atol=5e-3), (
        loss_sup32, ref_sup32)

    # --- bfloat16 path (bf16 inputs + bf16 pre-scaled anchors -> looser tol) ---
    loss_unsup16 = supcon_loss(feats16)
    loss_sup16 = supcon_loss(feats16, labels=labels)
    jax.block_until_ready(loss_unsup16)
    jax.block_until_ready(loss_sup16)
    ref_unsup16 = _supcon_loss_ref(feats16)
    ref_sup16 = _supcon_loss_ref(feats16, labels=labels)
    assert jnp.allclose(loss_unsup16, ref_unsup16, rtol=1e-2, atol=1e-2), (
        loss_unsup16, ref_unsup16)
    assert jnp.allclose(loss_sup16, ref_sup16, rtol=1e-2, atol=1e-2), (
        loss_sup16, ref_sup16)

    print("KERNEL_OK")
</pallas_src>

<mosaic_0001>
module attributes {stable_mosaic.version = 11 : i64} {
  func.func @_supcon_kernel(%arg0: i32, %arg1: i32, %arg2: memref<128x128xf32, #tpu.memory_space<vmem>>, %arg3: memref<128x128xf32, #tpu.memory_space<vmem>>, %arg4: memref<128x1xi32, #tpu.memory_space<vmem>>, %arg5: memref<1x128xi32, #tpu.memory_space<vmem>>, %arg6: memref<128x1xf32, #tpu.memory_space<vmem>>, %arg7: memref<128x1xf32, #tpu.memory_space<vmem>>, %arg8: memref<128x1xf32, #tpu.memory_space<vmem>>, %arg9: memref<128x1xf32, #tpu.memory_space<vmem>>, %arg10: memref<128x1xf32, #tpu.memory_space<vmem>>) attributes {dimension_semantics = [#tpu.dimension_semantics<parallel>, #tpu.dimension_semantics<arbitrary>], iteration_bounds = array<i64: 1, 1>, scalar_prefetch = 0 : i64, scratch_operands = 3 : i64, tpu.core_type = #tpu.core_type<tc>, window_params = [{transform_indices = @transform_0, window_bounds = array<i64: 128, 128>}, {transform_indices = @transform_1, window_bounds = array<i64: 128, 128>}, {transform_indices = @transform_2, window_bounds = array<i64: 128, 1>}, {transform_indices = @transform_3, window_bounds = array<i64: 1, 128>}, {transform_indices = @transform_4, window_bounds = array<i64: 128, 1>}, {transform_indices = @transform_5, window_bounds = array<i64: 128, 1>}]} {
    %c0_i32 = arith.constant 0 : i32
    %0 = arith.cmpi eq, %arg1, %c0_i32 : i32
    %1 = arith.extui %0 : i1 to i32
    %c0_i32_0 = arith.constant 0 : i32
    %2 = arith.cmpi ne, %1, %c0_i32_0 : i32
    scf.if %2 {
      %cst_16 = arith.constant -1.000000e+30 : f32
      %26 = vector.broadcast %cst_16 : f32 to vector<128x1xf32>
      %c0_17 = arith.constant 0 : index
      %c0_18 = arith.constant 0 : index
      %27 = vector.load %arg8[%c0_17, %c0_18] : memref<128x1xf32, #tpu.memory_space<vmem>>, vector<128x1xf32>
      tpu.vector_store %arg8[%c0_17, %c0_18], %26 {strides = array<i32>} : memref<128x1xf32, #tpu.memory_space<vmem>>, vector<128x1xf32>,
      %cst_19 = arith.constant 0.000000e+00 : f32
      %28 = vector.broadcast %cst_19 : f32 to vector<128x1xf32>
      %c0_20 = arith.constant 0 : index
      %c0_21 = arith.constant 0 : index
      %29 = vector.load %arg9[%c0_20, %c0_21] : memref<128x1xf32, #tpu.memory_space<vmem>>, vector<128x1xf32>
      tpu.vector_store %arg9[%c0_20, %c0_21], %28 {strides = array<i32>} : memref<128x1xf32, #tpu.memory_space<vmem>>, vector<128x1xf32>,
      %cst_22 = arith.constant 0.000000e+00 : f32
      %30 = vector.broadcast %cst_22 : f32 to vector<128x1xf32>
      %c0_23 = arith.constant 0 : index
      %c0_24 = arith.constant 0 : index
      %31 = vector.load %arg10[%c0_23, %c0_24] : memref<128x1xf32, #tpu.memory_space<vmem>>, vector<128x1xf32>
      tpu.vector_store %arg10[%c0_23, %c0_24], %30 {strides = array<i32>} : memref<128x1xf32, #tpu.memory_space<vmem>>, vector<128x1xf32>,
    } else {
    }
    %c0 = arith.constant 0 : index
    %c0_1 = arith.constant 0 : index
    %3 = vector.load %arg2[%c0, %c0_1] : memref<128x128xf32, #tpu.memory_space<vmem>>, vector<128x128xf32>
    %c0_2 = arith.constant 0 : index
    %c0_3 = arith.constant 0 : index
    %4 = vector.load %arg3[%c0_2, %c0_3] : memref<128x128xf32, #tpu.memory_space<vmem>>, vector<128x128xf32>
    %cst = arith.constant dense<0.000000e+00> : vector<128x128xf32>
    %5 = tpu.matmul %3, %4, %cst {dimension_numbers = #tpu.dot_dimension_numbers<[1], [0], [0], [1], [0, 0, 1, 1], [], []>} : vector<128x128xf32>, vector<128x128xf32>, vector<128x128xf32> -> vector<128x128xf32>
    %c0_4 = arith.constant 0 : index
    %c0_5 = arith.constant 0 : index
    %6 = vector.load %arg4[%c0_4, %c0_5] : memref<128x1xi32, #tpu.memory_space<vmem>>, vector<128x1xi32>
    %c0_6 = arith.constant 0 : index
    %c0_7 = arith.constant 0 : index
    %7 = vector.load %arg5[%c0_6, %c0_7] : memref<1x128xi32, #tpu.memory_space<vmem>>, vector<1x128xi32>
    %c128_i32 = arith.constant 128 : i32
    %8 = arith.muli %arg0, %c128_i32 : i32
    %c128_i32_8 = arith.constant 128 : i32
    %9 = arith.muli %arg1, %c128_i32_8 : i32
    %c128_i32_9 = arith.constant 128 : i32
    %10 = arith.addi %9, %c128_i32_9 : i32
    %11 = arith.cmpi slt, %8, %10 : i32
    %c128_i32_10 = arith.constant 128 : i32
    %12 = arith.addi %8, %c128_i32_10 : i32
    %13 = arith.cmpi slt, %9, %12 : i32
    %14 = arith.andi %11, %13 : i1
    %c128_i32_11 = arith.constant 128 : i32
    %15 = arith.addi %9, %c128_i32_11 : i32
    %c8_i32 = arith.constant 8 : i32
    %16 = arith.cmpi sgt, %15, %c8_i32 : i32
    %17 = arith.ori %14, %16 : i1
    %true = arith.constant true
    %18 = arith.xori %17, %true : i1
    %19 = arith.extui %18 : i1 to i32
    %c0_i32_12 = arith.constant 0 : i32
    %20 = arith.cmpi ne, %19, %c0_i32_12 : i32
    scf.if %20 {
      %26 = vector.broadcast %6 : vector<128x1xi32> to vector<128x128xi32>
      %27 = vector.broadcast %7 : vector<1x128xi32> to vector<128x128xi32>
      %28 = arith.cmpi eq, %26, %27 : vector<128x128xi32>
      %c0_16 = arith.constant 0 : index
      %c0_17 = arith.constant 0 : index
      %29 = vector.load %arg8[%c0_16, %c0_17] : memref<128x1xf32, #tpu.memory_space<vmem>>, vector<128x1xf32>
      %cst_18 = arith.constant dense<0xFF800000> : vector<128xf32>
      %30 = vector.multi_reduction <maximumf>, %5, %cst_18 [1] : vector<128x128xf32> to vector<128xf32>
      %31 = vector.shape_cast %30 : vector<128xf32> to vector<128x1xf32>
      %32 = arith.maximumf %29, %31 : vector<128x1xf32>
      %33 = vector.broadcast %32 : vector<128x1xf32> to vector<128x128xf32>
      %34 = arith.subf %5, %33 : vector<128x128xf32>
      %35 = math.exp %34 : vector<128x128xf32>
      %36 = arith.subf %29, %32 : vector<128x1xf32>
      %37 = math.exp %36 : vector<128x1xf32>
      %c0_19 = arith.constant 0 : index
      %c0_20 = arith.constant 0 : index
      %38 = vector.load %arg9[%c0_19, %c0_20] : memref<128x1xf32, #tpu.memory_space<vmem>>, vector<128x1xf32>
      %39 = arith.mulf %37, %38 : vector<128x1xf32>
      %cst_21 = arith.constant dense<0.000000e+00> : vector<128xf32>
      %40 = vector.multi_reduction <add>, %35, %cst_21 [1] : vector<128x128xf32> to vector<128xf32>
      %41 = vector.shape_cast %40 : vector<128xf32> to vector<128x1xf32>
      %42 = arith.addf %39, %41 : vector<128x1xf32>
      %c0_22 = arith.constant 0 : index
      %c0_23 = arith.constant 0 : index
      %43 = vector.load %arg9[%c0_22, %c0_23] : memref<128x1xf32, #tpu.memory_space<vmem>>, vector<128x1xf32>
      tpu.vector_store %arg9[%c0_22, %c0_23], %42 {strides = array<i32>} : memref<128x1xf32, #tpu.memory_space<vmem>>, vector<128x1xf32>,
      %c0_24 = arith.constant 0 : index
      %c0_25 = arith.constant 0 : index
      %44 = vector.load %arg8[%c0_24, %c0_25] : memref<128x1xf32, #tpu.memory_space<vmem>>, vector<128x1xf32>
      tpu.vector_store %arg8[%c0_24, %c0_25], %32 {strides = array<i32>} : memref<128x1xf32, #tpu.memory_space<vmem>>, vector<128x1xf32>,
      %c0_26 = arith.constant 0 : index
      %c0_27 = arith.constant 0 : index
      %45 = vector.load %arg10[%c0_26, %c0_27] : memref<128x1xf32, #tpu.memory_space<vmem>>, vector<128x1xf32>
      %cst_28 = arith.constant 0.000000e+00 : f32
      %46 = vector.broadcast %cst_28 : f32 to vector<128x128xf32>
      %47 = arith.select %28, %5, %46 : vector<128x128xi1>, vector<128x128xf32>
      %cst_29 = arith.constant dense<0.000000e+00> : vector<128xf32>
      %48 = vector.multi_reduction <add>, %47, %cst_29 [1] : vector<128x128xf32> to vector<128xf32>
      %49 = vector.shape_cast %48 : vector<128xf32> to vector<128x1xf32>
      %50 = arith.addf %45, %49 : vector<128x1xf32>
      %c0_30 = arith.constant 0 : index
      %c0_31 = arith.constant 0 : index
      %51 = vector.load %arg10[%c0_30, %c0_31] : memref<128x1xf32, #tpu.memory_space<vmem>>, vector<128x1xf32>
      tpu.vector_store %arg10[%c0_30, %c0_31], %50 {strides = array<i32>} : memref<128x1xf32, #tpu.memory_space<vmem>>, vector<128x1xf32>,
    } else {
    }
    %21 = arith.extui %17 : i1 to i32
    %c0_i32_13 = arith.constant 0 : i32
    %22 = arith.cmpi ne, %21, %c0_i32_13 : i32
    scf.if %22 {
      %26 = tpu.iota {dimensions = array<i32: 0>} : vector<128x1xi32>
      %27 = vector.broadcast %8 : i32 to vector<128x1xi32>
      %28 = arith.addi %27, %26 : vector<128x1xi32>
      %29 = tpu.iota {dimensions = array<i32: 1>} : vector<1x128xi32>
      %30 = vector.broadcast %9 : i32 to vector<1x128xi32>
      %31 = arith.addi %30, %29 : vector<1x128xi32>
      %c8_i32_16 = arith.constant 8 : i32
      %32 = vector.broadcast %c8_i32_16 : i32 to vector<1x128xi32>
      %33 = arith.cmpi slt, %31, %32 : vector<1x128xi32>
      %34 = vector.broadcast %28 : vector<128x1xi32> to vector<128x128xi32>
      %35 = vector.broadcast %31 : vector<1x128xi32> to vector<128x128xi32>
      %36 = arith.cmpi ne, %34, %35 : vector<128x128xi32>
      %37 = vector.broadcast %33 : vector<1x128xi1> to vector<128x128xi1>
      %38 = arith.andi %37, %36 : vector<128x128xi1>
      %cst_17 = arith.constant -1.000000e+30 : f32
      %39 = vector.broadcast %cst_17 : f32 to vector<128x128xf32>
      %40 = arith.select %38, %5, %39 : vector<128x128xi1>, vector<128x128xf32>
      %41 = vector.broadcast %6 : vector<128x1xi32> to vector<128x128xi32>
      %42 = vector.broadcast %7 : vector<1x128xi32> to vector<128x128xi32>
      %43 = arith.cmpi eq, %41, %42 : vector<128x128xi32>
      %44 = arith.andi %43, %38 : vector<128x128xi1>
      %c0_18 = arith.constant 0 : index
      %c0_19 = arith.constant 0 : index
      %45 = vector.load %arg8[%c0_18, %c0_19] : memref<128x1xf32, #tpu.memory_space<vmem>>, vector<128x1xf32>
      %cst_20 = arith.constant dense<0xFF800000> : vector<128xf32>
      %46 = vector.multi_reduction <maximumf>, %40, %cst_20 [1] : vector<128x128xf32> to vector<128xf32>
      %47 = vector.shape_cast %46 : vector<128xf32> to vector<128x1xf32>
      %48 = arith.maximumf %45, %47 : vector<128x1xf32>
      %49 = vector.broadcast %48 : vector<128x1xf32> to vector<128x128xf32>
      %50 = arith.subf %40, %49 : vector<128x128xf32>
      %51 = math.exp %50 : vector<128x128xf32>
      %cst_21 = arith.constant 0.000000e+00 : f32
      %52 = vector.broadcast %cst_21 : f32 to vector<128x128xf32>
      %53 = arith.select %38, %51, %52 : vector<128x128xi1>, vector<128x128xf32>
      %54 = arith.subf %45, %48 : vector<128x1xf32>
      %55 = math.exp %54 : vector<128x1xf32>
      %c0_22 = arith.constant 0 : index
      %c0_23 = arith.constant 0 : index
      %56 = vector.load %arg9[%c0_22, %c0_23] : memref<128x1xf32, #tpu.memory_space<vmem>>, vector<128x1xf32>
      %57 = arith.mulf %55, %56 : vector<128x1xf32>
      %cst_24 = arith.constant dense<0.000000e+00> : vector<128xf32>
      %58 = vector.multi_reduction <add>, %53, %cst_24 [1] : vector<128x128xf32> to vector<128xf32>
      %59 = vector.shape_cast %58 : vector<128xf32> to vector<128x1xf32>
      %60 = arith.addf %57, %59 : vector<128x1xf32>
      %c0_25 = arith.constant 0 : index
      %c0_26 = arith.constant 0 : index
      %61 = vector.load %arg9[%c0_25, %c0_26] : memref<128x1xf32, #tpu.memory_space<vmem>>, vector<128x1xf32>
      tpu.vector_store %arg9[%c0_25, %c0_26], %60 {strides = array<i32>} : memref<128x1xf32, #tpu.memory_space<vmem>>, vector<128x1xf32>,
      %c0_27 = arith.constant 0 : index
      %c0_28 = arith.constant 0 : index
      %62 = vector.load %arg8[%c0_27, %c0_28] : memref<128x1xf32, #tpu.memory_space<vmem>>, vector<128x1xf32>
      tpu.vector_store %arg8[%c0_27, %c0_28], %48 {strides = array<i32>} : memref<128x1xf32, #tpu.memory_space<vmem>>, vector<128x1xf32>,
      %c0_29 = arith.constant 0 : index
      %c0_30 = arith.constant 0 : index
      %63 = vector.load %arg10[%c0_29, %c0_30] : memref<128x1xf32, #tpu.memory_space<vmem>>, vector<128x1xf32>
      %cst_31 = arith.constant 0.000000e+00 : f32
      %64 = vector.broadcast %cst_31 : f32 to vector<128x128xf32>
      %65 = arith.select %44, %5, %64 : vector<128x128xi1>, vector<128x128xf32>
      %cst_32 = arith.constant dense<0.000000e+00> : vector<128xf32>
      %66 = vector.multi_reduction <add>, %65, %cst_32 [1] : vector<128x128xf32> to vector<128xf32>
      %67 = vector.shape_cast %66 : vector<128xf32> to vector<128x1xf32>
      %68 = arith.addf %63, %67 : vector<128x1xf32>
      %c0_33 = arith.constant 0 : index
      %c0_34 = arith.constant 0 : index
      %69 = vector.load %arg10[%c0_33, %c0_34] : memref<128x1xf32, #tpu.memory_space<vmem>>, vector<128x1xf32>
      tpu.vector_store %arg10[%c0_33, %c0_34], %68 {strides = array<i32>} : memref<128x1xf32, #tpu.memory_space<vmem>>, vector<128x1xf32>,
    } else {
    }
    %c0_i32_14 = arith.constant 0 : i32
    %23 = arith.cmpi eq, %arg1, %c0_i32_14 : i32
    %24 = arith.extui %23 : i1 to i32
    %c0_i32_15 = arith.constant 0 : i32
    %25 = arith.cmpi ne, %24, %c0_i32_15 : i32
    scf.if %25 {
      %26 = tpu.iota {dimensions = array<i32: 0>} : vector<128x1xi32>
      %27 = vector.broadcast %8 : i32 to vector<128x1xi32>
      %28 = arith.addi %27, %26 : vector<128x1xi32>
      %c8_i32_16 = arith.constant 8 : i32
      %29 = vector.broadcast %c8_i32_16 : i32 to vector<128x1xi32>
      %30 = arith.cmpi slt, %28, %29 : vector<128x1xi32>
      %c0_17 = arith.constant 0 : index
      %c0_18 = arith.constant 0 : index
      %31 = vector.load %arg8[%c0_17, %c0_18] : memref<128x1xf32, #tpu.memory_space<vmem>>, vector<128x1xf32>
      %c0_19 = arith.constant 0 : index
      %c0_20 = arith.constant 0 : index
      %32 = vector.load %arg9[%c0_19, %c0_20] : memref<128x1xf32, #tpu.memory_space<vmem>>, vector<128x1xf32>
      %33 = math.log %32 : vector<128x1xf32>
      %34 = arith.addf %31, %33 : vector<128x1xf32>
      %c0_21 = arith.constant 0 : index
      %c0_22 = arith.constant 0 : index
      %35 = vector.load %arg10[%c0_21, %c0_22] : memref<128x1xf32, #tpu.memory_space<vmem>>, vector<128x1xf32>
      %c0_23 = arith.constant 0 : index
      %c0_24 = arith.constant 0 : index
      %36 = vector.load %arg6[%c0_23, %c0_24] : memref<128x1xf32, #tpu.memory_space<vmem>>, vector<128x1xf32>
      %37 = arith.mulf %35, %36 : vector<128x1xf32>
      %38 = arith.subf %37, %34 : vector<128x1xf32>
      %cst_25 = arith.constant -1.000000e+00 : f32
      %39 = vector.broadcast %cst_25 : f32 to vector<128x1xf32>
      %40 = arith.mulf %39, %38 : vector<128x1xf32>
      %cst_26 = arith.constant 0.000000e+00 : f32
      %41 = vector.broadcast %cst_26 : f32 to vector<128x1xf32>
      %42 = arith.select %30, %40, %41 : vector<128x1xi1>, vector<128x1xf32>
      %c0_27 = arith.constant 0 : index
      %c0_28 = arith.constant 0 : index
      %43 = vector.load %arg7[%c0_27, %c0_28] : memref<128x1xf32, #tpu.memory_space<vmem>>, vector<128x1xf32>
      tpu.vector_store %arg7[%c0_27, %c0_28], %42 {strides = array<i32>} : memref<128x1xf32, #tpu.memory_space<vmem>>, vector<128x1xf32>,
    } else {
    }
    return
  }
  func.func @transform_0(%arg0: i32, %arg1: i32) -> (i32, i32) {
    %c0_i32 = arith.constant 0 : i32
    %c0_i32_0 = arith.constant 0 : i32
    return %arg0, %c0_i32 : i32, i32
  }
  func.func @transform_1(%arg0: i32, %arg1: i32) -> (i32, i32) {
    %c0_i32 = arith.constant 0 : i32
    %c0_i32_0 = arith.constant 0 : i32
    return %c0_i32, %arg1 : i32, i32
  }
  func.func @transform_2(%arg0: i32, %arg1: i32) -> (i32, i32) {
    %c0_i32 = arith.constant 0 : i32
    %c0_i32_0 = arith.constant 0 : i32
    return %arg0, %c0_i32 : i32, i32
  }
  func.func @transform_3(%arg0: i32, %arg1: i32) -> (i32, i32) {
    %c0_i32 = arith.constant 0 : i32
    %c0_i32_0 = arith.constant 0 : i32
    return %c0_i32, %arg1 : i32, i32
  }
  func.func @transform_4(%arg0: i32, %arg1: i32) -> (i32, i32) {
    %c0_i32 = arith.constant 0 : i32
    %c0_i32_0 = arith.constant 0 : i32
    return %arg0, %c0_i32 : i32, i32
  }
  func.func @transform_5(%arg0: i32, %arg1: i32) -> (i32, i32) {
    %c0_i32 = arith.constant 0 : i32
    %c0_i32_0 = arith.constant 0 : i32
    return %arg0, %c0_i32 : i32, i32
  }
}

</mosaic_0001>

<llo_original>
// kernel: tpu_custom_call.1
$region0: #{tpu_custom_call.1}
  #allocation0 [shape = 'u32[]', space=smem, size = 0x4, offset = 0x4, fixed_abs, tag = 'smem constant byte address 0x4 - core index']
  #allocation1 [shape = 'u32[144,128]{1,0:T(1,128)}', space=vmem, size = 0x12000, scoped, tag = 'internal scratch']
  #allocation2 [shape = 'f32[128,1]{1,0:T(8,128)}', space=vmem, size = 0x10000, scoped, tag = 'scratch operand']
  #allocation3 [shape = 'f32[128,1]{1,0:T(8,128)}', space=vmem, size = 0x10000, scoped, tag = 'scratch operand']
  #allocation4 [shape = 'f32[128,1]{1,0:T(8,128)}', space=vmem, size = 0x10000, scoped, tag = 'scratch operand']
  %s0 = inlined_call_operand.vmem [shape: f32[128,128], index: 0, kind: input, shape index: {}]
  %s1 = inlined_call_operand.vmem [shape: f32[128,128], index: 1, kind: input, shape index: {}]
  %s2 = inlined_call_operand.vmem [shape: s32[128,1], index: 2, kind: input, shape index: {}]
  %s3 = inlined_call_operand.vmem [shape: s32[1,128], index: 3, kind: input, shape index: {}]
  %s4 = inlined_call_operand.vmem [shape: f32[128,1], index: 4, kind: input, shape index: {}]
  %s5 = inlined_call_operand.vmem [shape: f32[128,1], index: 5, kind: output, shape index: {}]
  %s6 = sld [smem:[#allocation0]]
  $region46: #{tpu_custom_call.1} parent=0
    _
  %s8 = ssub.s32 1, %s6
  %s9 = scalar_select 0, %s8, %s6
  // Predicated region
  $region2: #{tpu_custom_call.1} parent=0 // pred_check
    _
  $region3: #{tpu_custom_call.1} parent=0 // pred_check_branch
    %11 = sbr.rel (0) target = $region5
  $region4: #{tpu_custom_call.1} parent=0 // pred_region
    _
  $region5: #{tpu_custom_call.1} parent=0 // pred_fallthru
    _
  // Predicated region
  $region6: #{tpu_custom_call.1} parent=0 // pred_check
    _
  $region7: #{tpu_custom_call.1} parent=0 // pred_check_branch
    %13 = sbr.rel (0) target = $region9
  $region8: #{tpu_custom_call.1} parent=0 // pred_region
    _
  $region9: #{tpu_custom_call.1} parent=0 // pred_fallthru
    _
  // Predicated region
  $region10: #{tpu_custom_call.1} parent=0 // pred_check
    _
  $region11: #{tpu_custom_call.1} parent=0 // pred_check_branch
    %15 = sbr.rel (0) target = $region13
  $region12: #{tpu_custom_call.1} parent=0 // pred_region
    _
  $region13: #{tpu_custom_call.1} parent=0 // pred_fallthru
    _
  // Predicated region
  $region14: #{tpu_custom_call.1} parent=0 // pred_check
    _
  $region15: #{tpu_custom_call.1} parent=0 // pred_check_branch
    %17 = sbr.rel (0) target = $region17
  $region16: #{tpu_custom_call.1} parent=0 // pred_region
    _
  $region17: #{tpu_custom_call.1} parent=0 // pred_fallthru
    _
  // Predicated region
  $region18: #{tpu_custom_call.1} parent=0 // pred_check
    _
  $region19: #{tpu_custom_call.1} parent=0 // pred_check_branch
    %19 = sbr.rel (0) target = $region21
  $region20: #{tpu_custom_call.1} parent=0 // pred_region
    _
  $region21: #{tpu_custom_call.1} parent=0 // pred_fallthru
    _
  %p20 = scmp.eq.s32.totalorder 0, 0
  // Predicated region
  $region22: #{tpu_custom_call.1} parent=0 // pred_check
    %p21 = pneg %p20
  $region23: #{tpu_custom_call.1} parent=0 // pred_check_branch
    %23 = sbr.rel (%p21) target = $region25
  $region24: #{tpu_custom_call.1} parent=0 // pred_region
    %vm24 = vcmask 7168
    %25 = vst.msk [vmem:[#allocation2] sm:$0xff] %vm24, -1e+30
    %26 = vst.msk [vmem:[#allocation2 + $0x8] sm:$0xff] %vm24, -1e+30
    %27 = vst.msk [vmem:[#allocation2 + $0x10] sm:$0xff] %vm24, -1e+30
    %28 = vst.msk [vmem:[#allocation2 + $0x18] sm:$0xff] %vm24, -1e+30
    %29 = vst.msk [vmem:[#allocation2 + $0x20] sm:$0xff] %vm24, -1e+30
    %30 = vst.msk [vmem:[#allocation2 + $0x28] sm:$0xff] %vm24, -1e+30
    %31 = vst.msk [vmem:[#allocation2 + $0x30] sm:$0xff] %vm24, -1e+30
    %32 = vst.msk [vmem:[#allocation2 + $0x38] sm:$0xff] %vm24, -1e+30
    %33 = vst.msk [vmem:[#allocation2 + $0x40] sm:$0xff] %vm24, -1e+30
    %34 = vst.msk [vmem:[#allocation2 + $0x48] sm:$0xff] %vm24, -1e+30
    %35 = vst.msk [vmem:[#allocation2 + $0x50] sm:$0xff] %vm24, -1e+30
    %36 = vst.msk [vmem:[#allocation2 + $0x58] sm:$0xff] %vm24, -1e+30
    %37 = vst.msk [vmem:[#allocation2 + $0x60] sm:$0xff] %vm24, -1e+30
    %38 = vst.msk [vmem:[#allocation2 + $0x68] sm:$0xff] %vm24, -1e+30
    %39 = vst.msk [vmem:[#allocation2 + $0x70] sm:$0xff] %vm24, -1e+30
    %40 = vst.msk [vmem:[#allocation2 + $0x78] sm:$0xff] %vm24, -1e+30
    %41 = vst.msk [vmem:[#allocation3] sm:$0xff] %vm24, 0.0
    %42 = vst.msk [vmem:[#allocation3 + $0x8] sm:$0xff] %vm24, 0.0
    %43 = vst.msk [vmem:[#allocation3 + $0x10] sm:$0xff] %vm24, 0.0
    %44 = vst.msk [vmem:[#allocation3 + $0x18] sm:$0xff] %vm24, 0.0
    %45 = vst.msk [vmem:[#allocation3 + $0x20] sm:$0xff] %vm24, 0.0
    %46 = vst.msk [vmem:[#allocation3 + $0x28] sm:$0xff] %vm24, 0.0
    %47 = vst.msk [vmem:[#allocation3 + $0x30] sm:$0xff] %vm24, 0.0
    %48 = vst.msk [vmem:[#allocation3 + $0x38] sm:$0xff] %vm24, 0.0
    %49 = vst.msk [vmem:[#allocation3 + $0x40] sm:$0xff] %vm24, 0.0
    %50 = vst.msk [vmem:[#allocation3 + $0x48] sm:$0xff] %vm24, 0.0
    %51 = vst.msk [vmem:[#allocation3 + $0x50] sm:$0xff] %vm24, 0.0
    %52 = vst.msk [vmem:[#allocation3 + $0x58] sm:$0xff] %vm24, 0.0
    %53 = vst.msk [vmem:[#allocation3 + $0x60] sm:$0xff] %vm24, 0.0
    %54 = vst.msk [vmem:[#allocation3 + $0x68] sm:$0xff] %vm24, 0.0
    %55 = vst.msk [vmem:[#allocation3 + $0x70] sm:$0xff] %vm24, 0.0
    %56 = vst.msk [vmem:[#allocation3 + $0x78] sm:$0xff] %vm24, 0.0
    %57 = vst.msk [vmem:[#allocation4] sm:$0xff] %vm24, 0.0
    %58 = vst.msk [vmem:[#allocation4 + $0x8] sm:$0xff] %vm24, 0.0
    %59 = vst.msk [vmem:[#allocation4 + $0x10] sm:$0xff] %vm24, 0.0
    %60 = vst.msk [vmem:[#allocation4 + $0x18] sm:$0xff] %vm24, 0.0
    %61 = vst.msk [vmem:[#allocation4 + $0x20] sm:$0xff] %vm24, 0.0
    %62 = vst.msk [vmem:[#allocation4 + $0x28] sm:$0xff] %vm24, 0.0
    %63 = vst.msk [vmem:[#allocation4 + $0x30] sm:$0xff] %vm24, 0.0
    %64 = vst.msk [vmem:[#allocation4 + $0x38] sm:$0xff] %vm24, 0.0
    %65 = vst.msk [vmem:[#allocation4 + $0x40] sm:$0xff] %vm24, 0.0
    %66 = vst.msk [vmem:[#allocation4 + $0x48] sm:$0xff] %vm24, 0.0
    %67 = vst.msk [vmem:[#allocation4 + $0x50] sm:$0xff] %vm24, 0.0
    %68 = vst.msk [vmem:[#allocation4 + $0x58] sm:$0xff] %vm24, 0.0
    %69 = vst.msk [vmem:[#allocation4 + $0x60] sm:$0xff] %vm24, 0.0
    %70 = vst.msk [vmem:[#allocation4 + $0x68] sm:$0xff] %vm24, 0.0
    %71 = vst.msk [vmem:[#allocation4 + $0x70] sm:$0xff] %vm24, 0.0
    %72 = vst.msk [vmem:[#allocation4 + $0x78] sm:$0xff] %vm24, 0.0
  $region25: #{tpu_custom_call.1} parent=0 // pred_fallthru
    _
  %v73 = vld [vmem:[%s0] sm:$0xff]
  %v74 = vld [vmem:[%s0 + $0x8] sm:$0xff]
  %v75 = vld [vmem:[%s0 + $0x10] sm:$0xff]
  %v76 = vld [vmem:[%s0 + $0x18] sm:$0xff]
  %v77 = vld [vmem:[%s0 + $0x20] sm:$0xff]
  %v78 = vld [vmem:[%s0 + $0x28] sm:$0xff]
  %v79 = vld [vmem:[%s0 + $0x30] sm:$0xff]
  %v80 = vld [vmem:[%s0 + $0x38] sm:$0xff]
  %v81 = vld [vmem:[%s0 + $0x40] sm:$0xff]
  %v82 = vld [vmem:[%s0 + $0x48] sm:$0xff]
  %v83 = vld [vmem:[%s0 + $0x50] sm:$0xff]
  %v84 = vld [vmem:[%s0 + $0x58] sm:$0xff]
  %v85 = vld [vmem:[%s0 + $0x60] sm:$0xff]
  %v86 = vld [vmem:[%s0 + $0x68] sm:$0xff]
  %v87 = vld [vmem:[%s0 + $0x70] sm:$0xff]
  %v88 = vld [vmem:[%s0 + $0x78] sm:$0xff]
  %v89 = vld [vmem:[%s1] sm:$0xff]
  %v90 = vld [vmem:[%s1 + $0x8] sm:$0xff]
  %v91 = vld [vmem:[%s1 + $0x10] sm:$0xff]
  %v92 = vld [vmem:[%s1 + $0x18] sm:$0xff]
  %v93 = vld [vmem:[%s1 + $0x20] sm:$0xff]
  %v94 = vld [vmem:[%s1 + $0x28] sm:$0xff]
  %v95 = vld [vmem:[%s1 + $0x30] sm:$0xff]
  %v96 = vld [vmem:[%s1 + $0x38] sm:$0xff]
  %v97 = vld [vmem:[%s1 + $0x40] sm:$0xff]
  %v98 = vld [vmem:[%s1 + $0x48] sm:$0xff]
  %v99 = vld [vmem:[%s1 + $0x50] sm:$0xff]
  %v100 = vld [vmem:[%s1 + $0x58] sm:$0xff]
  %v101 = vld [vmem:[%s1 + $0x60] sm:$0xff]
  %v102 = vld [vmem:[%s1 + $0x68] sm:$0xff]
  %v103 = vld [vmem:[%s1 + $0x70] sm:$0xff]
  %v104 = vld [vmem:[%s1 + $0x78] sm:$0xff]
  %105 = vmatprep.subr.mxu0 0.0
  %106 = vmatpush1.msra.mxu0 %v104
  %107 = vmatprep.subr.mxu0 0.0
  %108 = vmatpush1.msra.mxu0 %v103
  %109 = vmatprep.subr.mxu0 0.0
  %110 = vmatpush1.msra.mxu0 %v102
  %111 = vmatprep.subr.mxu0 0.0
  %112 = vmatpush1.msra.mxu0 %v101
  %113 = vmatprep.subr.mxu0 0.0
  %114 = vmatpush1.msra.mxu0 %v100
  %115 = vmatprep.subr.mxu0 0.0
  %116 = vmatpush1.msra.mxu0 %v99
  %117 = vmatprep.subr.mxu0 0.0
  %118 = vmatpush1.msra.mxu0 %v98
  %119 = vmatprep.subr.mxu0 0.0
  %120 = vmatpush1.msra.mxu0 %v97
  %121 = vmatprep.subr.mxu0 0.0
  %122 = vmatpush1.msra.mxu0 %v96
  %123 = vmatprep.subr.mxu0 0.0
  %124 = vmatpush1.msra.mxu0 %v95
  %125 = vmatprep.subr.mxu0 0.0
  %126 = vmatpush1.msra.mxu0 %v94
  %127 = vmatprep.subr.mxu0 0.0
  %128 = vmatpush1.msra.mxu0 %v93
  %129 = vmatprep.subr.mxu0 0.0
  %130 = vmatpush1.msra.mxu0 %v92
  %131 = vmatprep.subr.mxu0 0.0
  %132 = vmatpush1.msra.mxu0 %v91
  %133 = vmatprep.subr.mxu0 0.0
  %134 = vmatpush1.msra.mxu0 %v90
  %135 = vmatprep.subr.mxu0 0.0
  %136 = vmatpush1.msra.mxu0 %v89
  %137 = vmatprep.subr.mxu0 0.0
  %138 = vmatpush2.msra.mxu0 0.0
  %139 = vmatprep.subr.mxu0 0.0
  %140 = vmatpush2.msra.mxu0 0.0
  %141 = vmatprep.subr.mxu0 0.0
  %142 = vmatpush2.msra.mxu0 0.0
  %143 = vmatprep.subr.mxu0 0.0
  %144 = vmatpush2.msra.mxu0 0.0
  %145 = vmatprep.subr.mxu0 0.0
  %146 = vmatpush2.msra.mxu0 0.0
  %147 = vmatprep.subr.mxu0 0.0
  %148 = vmatpush2.msra.mxu0 0.0
  %149 = vmatprep.subr.mxu0 0.0
  %150 = vmatpush2.msra.mxu0 0.0
  %151 = vmatprep.subr.mxu0 0.0
  %152 = vmatpush2.msra.mxu0 0.0
  %153 = vmatprep.subr.mxu0 0.0
  %154 = vmatpush2.msra.mxu0 0.0
  %155 = vmatprep.subr.mxu0 0.0
  %156 = vmatpush2.msra.mxu0 0.0
  %157 = vmatprep.subr.mxu0 0.0
  %158 = vmatpush2.msra.mxu0 0.0
  %159 = vmatprep.subr.mxu0 0.0
  %160 = vmatpush2.msra.mxu0 0.0
  %161 = vmatprep.subr.mxu0 0.0
  %162 = vmatpush2.msra.mxu0 0.0
  %163 = vmatprep.subr.mxu0 0.0
  %164 = vmatpush2.msra.mxu0 0.0
  %165 = vmatprep.subr.mxu0 0.0
  %166 = vmatpush2.msra.mxu0 0.0
  %167 = vmatprep.subr.mxu0 0.0
  %168 = vmatpush2.msra.mxu0 0.0
  %169 = vmatprep.mubr.f32.mxu0 0.0
  %170 = vmatmul.mubr.f32.gmra.mxu0 %v73
  %v171 = vpop.f32.mrf.mxu0
  %v172 = vadd.f32 0.0, %v171
  %v173 = vpop.f32.mrf.mxu0
  %174 = vmatprep.mubr.f32.mxu0 0.0
  %175 = vmatmul.mubr.f32.gmra.mxu0 %v74
  %v176 = vpop.f32.mrf.mxu0
  %v177 = vadd.f32 0.0, %v176
  %v178 = vpop.f32.mrf.mxu0
  %179 = vmatprep.mubr.f32.mxu0 0.0
  %180 = vmatmul.mubr.f32.gmra.mxu0 %v75
  %v181 = vpop.f32.mrf.mxu0
  %v182 = vadd.f32 0.0, %v181
  %v183 = vpop.f32.mrf.mxu0
  %184 = vmatprep.mubr.f32.mxu0 0.0
  %185 = vmatmul.mubr.f32.gmra.mxu0 %v76
  %v186 = vpop.f32.mrf.mxu0
  %v187 = vadd.f32 0.0, %v186
  %v188 = vpop.f32.mrf.mxu0
  %189 = vmatprep.mubr.f32.mxu0 0.0
  %190 = vmatmul.mubr.f32.gmra.mxu0 %v77
  %v191 = vpop.f32.mrf.mxu0
  %v192 = vadd.f32 0.0, %v191
  %v193 = vpop.f32.mrf.mxu0
  %194 = vmatprep.mubr.f32.mxu0 0.0
  %195 = vmatmul.mubr.f32.gmra.mxu0 %v78
  %v196 = vpop.f32.mrf.mxu0
  %v197 = vadd.f32 0.0, %v196
  %v198 = vpop.f32.mrf.mxu0
  %199 = vmatprep.mubr.f32.mxu0 0.0
  %200 = vmatmul.mubr.f32.gmra.mxu0 %v79
  %v201 = vpop.f32.mrf.mxu0
  %v202 = vadd.f32 0.0, %v201
  %v203 = vpop.f32.mrf.mxu0
  %204 = vmatprep.mubr.f32.mxu0 0.0
  %205 = vmatmul.mubr.f32.gmra.mxu0 %v80
  %v206 = vpop.f32.mrf.mxu0
  %v207 = vadd.f32 0.0, %v206
  %v208 = vpop.f32.mrf.mxu0
  %209 = vmatprep.mubr.f32.mxu0 0.0
  %210 = vmatmul.mubr.f32.gmra.mxu0 %v81
  %v211 = vpop.f32.mrf.mxu0
  %v212 = vadd.f32 0.0, %v211
  %v213 = vpop.f32.mrf.mxu0
  %214 = vmatprep.mubr.f32.mxu0 0.0
  %215 = vmatmul.mubr.f32.gmra.mxu0 %v82
  %v216 = vpop.f32.mrf.mxu0
  %v217 = vadd.f32 0.0, %v216
  %v218 = vpop.f32.mrf.mxu0
  %219 = vmatprep.mubr.f32.mxu0 0.0
  %220 = vmatmul.mubr.f32.gmra.mxu0 %v83
  %v221 = vpop.f32.mrf.mxu0
  %v222 = vadd.f32 0.0, %v221
  %v223 = vpop.f32.mrf.mxu0
  %224 = vmatprep.mubr.f32.mxu0 0.0
  %225 = vmatmul.mubr.f32.gmra.mxu0 %v84
  %v226 = vpop.f32.mrf.mxu0
  %v227 = vadd.f32 0.0, %v226
  %v228 = vpop.f32.mrf.mxu0
  %229 = vmatprep.mubr.f32.mxu0 0.0
  %230 = vmatmul.mubr.f32.gmra.mxu0 %v85
  %v231 = vpop.f32.mrf.mxu0
  %v232 = vadd.f32 0.0, %v231
  %v233 = vpop.f32.mrf.mxu0
  %234 = vmatprep.mubr.f32.mxu0 0.0
  %235 = vmatmul.mubr.f32.gmra.mxu0 %v86
  %v236 = vpop.f32.mrf.mxu0
  %v237 = vadd.f32 0.0, %v236
  %v238 = vpop.f32.mrf.mxu0
  %239 = vmatprep.mubr.f32.mxu0 0.0
  %240 = vmatmul.mubr.f32.gmra.mxu0 %v87
  %v241 = vpop.f32.mrf.mxu0
  %v242 = vadd.f32 0.0, %v241
  %v243 = vpop.f32.mrf.mxu0
  %244 = vmatprep.mubr.f32.mxu0 0.0
  %245 = vmatmul.mubr.f32.gmra.mxu0 %v88
  %v246 = vpop.f32.mrf.mxu0
  %v247 = vadd.f32 0.0, %v246
  %v248 = vpop.f32.mrf.mxu0
  %249 = vdwg.mxu0
  %v250 = vld [vmem:[%s2] sm:$0xff]
  %v251 = vld [vmem:[%s2 + $0x8] sm:$0xff]
  %v252 = vld [vmem:[%s2 + $0x10] sm:$0xff]
  %v253 = vld [vmem:[%s2 + $0x18] sm:$0xff]
  %v254 = vld [vmem:[%s2 + $0x20] sm:$0xff]
  %v255 = vld [vmem:[%s2 + $0x28] sm:$0xff]
  %v256 = vld [vmem:[%s2 + $0x30] sm:$0xff]
  %v257 = vld [vmem:[%s2 + $0x38] sm:$0xff]
  %v258 = vld [vmem:[%s2 + $0x40] sm:$0xff]
  %v259 = vld [vmem:[%s2 + $0x48] sm:$0xff]
  %v260 = vld [vmem:[%s2 + $0x50] sm:$0xff]
  %v261 = vld [vmem:[%s2 + $0x58] sm:$0xff]
  %v262 = vld [vmem:[%s2 + $0x60] sm:$0xff]
  %v263 = vld [vmem:[%s2 + $0x68] sm:$0xff]
  %v264 = vld [vmem:[%s2 + $0x70] sm:$0xff]
  %v265 = vld [vmem:[%s2 + $0x78] sm:$0xff]
  %v266 = vld [vmem:[%s3] sm:$0x1]
  %s267 = smul.u32 0, 128
  %s268 = smul.u32 0, 128
  %s269 = sadd.s32 %s268, 128
  %p270 = scmp.lt.s32.totalorder %s267, %s269
  %s271 = sadd.s32 %s267, 128
  %p272 = scmp.lt.s32.totalorder %s268, %s271
  %p273 = pnand %p270, %p272
  %p274 = pneg %p273
  %p275 = scmp.gt.s32.totalorder %s269, 8
  %p276 = por %p274, %p275
  // Predicated region
  $region26: #{tpu_custom_call.1} parent=0 // pred_check
    %p277 = pneg %p276
  $region27: #{tpu_custom_call.1} parent=0 // pred_check_branch
    %279 = sbr.rel (%p277) target = $region29
  $region28: #{tpu_custom_call.1} parent=0 // pred_region
    %v280 = vlaneseq
    %v281 = vshrl.u32 %v280, 7
    %v282 = vadd.s32 %v281, 8
    %v283 = vadd.s32 %v281, 16
    %v284 = vadd.s32 %v281, 24
    %v285 = vadd.s32 %v281, 32
    %v286 = vadd.s32 %v281, 40
    %v287 = vadd.s32 %v281, 48
    %v288 = vadd.s32 %v281, 56
    %v289 = vadd.s32 %v281, 64
    %v290 = vadd.s32 %v281, 72
    %v291 = vadd.s32 %v281, 80
    %v292 = vadd.s32 %v281, 88
    %v293 = vadd.s32 %v281, 96
    %v294 = vadd.s32 %v281, 104
    %v295 = vadd.s32 %v281, 112
    %v296 = vadd.s32 %v281, 120
    %v297 = vstv %s267
    %v298 = vadd.s32 %v297, %v281
    %v299 = vadd.s32 %v297, %v282
    %v300 = vadd.s32 %v297, %v283
    %v301 = vadd.s32 %v297, %v284
    %v302 = vadd.s32 %v297, %v285
    %v303 = vadd.s32 %v297, %v286
    %v304 = vadd.s32 %v297, %v287
    %v305 = vadd.s32 %v297, %v288
    %v306 = vadd.s32 %v297, %v289
    %v307 = vadd.s32 %v297, %v290
    %v308 = vadd.s32 %v297, %v291
    %v309 = vadd.s32 %v297, %v292
    %v310 = vadd.s32 %v297, %v293
    %v311 = vadd.s32 %v297, %v294
    %v312 = vadd.s32 %v297, %v295
    %v313 = vadd.s32 %v297, %v296
    %v314 = vlaneseq
    %v315 = vand.u32 %v314, 127
    %v316 = vstv %s268
    %v317 = vadd.s32 %v316, %v315
    %vm318 = vcmp.lt.s32.totalorder %v317, 8
    %vm319 = vcmp.ne.s32.totalorder %v298, %v317
    %vm320 = vcmp.ne.s32.totalorder %v299, %v317
    %vm321 = vcmp.ne.s32.totalorder %v300, %v317
    %vm322 = vcmp.ne.s32.totalorder %v301, %v317
    %vm323 = vcmp.ne.s32.totalorder %v302, %v317
    %vm324 = vcmp.ne.s32.totalorder %v303, %v317
    %vm325 = vcmp.ne.s32.totalorder %v304, %v317
    %vm326 = vcmp.ne.s32.totalorder %v305, %v317
    %vm327 = vcmp.ne.s32.totalorder %v306, %v317
    %vm328 = vcmp.ne.s32.totalorder %v307, %v317
    %vm329 = vcmp.ne.s32.totalorder %v308, %v317
    %vm330 = vcmp.ne.s32.totalorder %v309, %v317
    %vm331 = vcmp.ne.s32.totalorder %v310, %v317
    %vm332 = vcmp.ne.s32.totalorder %v311, %v317
    %vm333 = vcmp.ne.s32.totalorder %v312, %v317
    %vm334 = vcmp.ne.s32.totalorder %v313, %v317
    %v335 = vsel %vm318, 1, 0
    %vm336 = vcmp.eq.s32.totalorder %v335, 1
    %vm337 = vmand %vm336, %vm319
    %vm338 = vmand %vm336, %vm320
    %vm339 = vmand %vm336, %vm321
    %vm340 = vmand %vm336, %vm322
    %vm341 = vmand %vm336, %vm323
    %vm342 = vmand %vm336, %vm324
    %vm343 = vmand %vm336, %vm325
    %vm344 = vmand %vm336, %vm326
    %vm345 = vmand %vm336, %vm327
    %vm346 = vmand %vm336, %vm328
    %vm347 = vmand %vm336, %vm329
    %vm348 = vmand %vm336, %vm330
    %vm349 = vmand %vm336, %vm331
    %vm350 = vmand %vm336, %vm332
    %vm351 = vmand %vm336, %vm333
    %vm352 = vmand %vm336, %vm334
    %v353 = vsel %vm337, %v172, -1e+30
    %v354 = vsel %vm338, %v177, -1e+30
    %v355 = vsel %vm339, %v182, -1e+30
    %v356 = vsel %vm340, %v187, -1e+30
    %v357 = vsel %vm341, %v192, -1e+30
    %v358 = vsel %vm342, %v197, -1e+30
    %v359 = vsel %vm343, %v202, -1e+30
    %v360 = vsel %vm344, %v207, -1e+30
    %v361 = vsel %vm345, %v212, -1e+30
    %v362 = vsel %vm346, %v217, -1e+30
    %v363 = vsel %vm347, %v222, -1e+30
    %v364 = vsel %vm348, %v227, -1e+30
    %v365 = vsel %vm349, %v232, -1e+30
    %v366 = vsel %vm350, %v237, -1e+30
    %v367 = vsel %vm351, %v242, -1e+30
    %v368 = vsel %vm352, %v247, -1e+30
    %369 = vset.pattern.permute.xlu0 0
    %370 = vperm.xlu0 %369, %v250
    %v371 = vpop.permute.xlu0 %370
    %372 = vset.pattern.permute.xlu0 0
    %373 = vperm.xlu0 %372, %v251
    %v374 = vpop.permute.xlu0 %373
    %375 = vset.pattern.permute.xlu0 0
    %376 = vperm.xlu0 %375, %v252
    %v377 = vpop.permute.xlu0 %376
    %378 = vset.pattern.permute.xlu0 0
    %379 = vperm.xlu0 %378, %v253
    %v380 = vpop.permute.xlu0 %379
    %381 = vset.pattern.permute.xlu0 0
    %382 = vperm.xlu0 %381, %v254
    %v383 = vpop.permute.xlu0 %382
    %384 = vset.pattern.permute.xlu0 0
    %385 = vperm.xlu0 %384, %v255
    %v386 = vpop.permute.xlu0 %385
    %387 = vset.pattern.permute.xlu0 0
    %388 = vperm.xlu0 %387, %v256
    %v389 = vpop.permute.xlu0 %388
    %390 = vset.pattern.permute.xlu0 0
    %391 = vperm.xlu0 %390, %v257
    %v392 = vpop.permute.xlu0 %391
    %393 = vset.pattern.permute.xlu0 0
    %394 = vperm.xlu0 %393, %v258
    %v395 = vpop.permute.xlu0 %394
    %396 = vset.pattern.permute.xlu0 0
    %397 = vperm.xlu0 %396, %v259
    %v398 = vpop.permute.xlu0 %397
    %399 = vset.pattern.permute.xlu0 0
    %400 = vperm.xlu0 %399, %v260
    %v401 = vpop.permute.xlu0 %400
    %402 = vset.pattern.permute.xlu0 0
    %403 = vperm.xlu0 %402, %v261
    %v404 = vpop.permute.xlu0 %403
    %405 = vset.pattern.permute.xlu0 0
    %406 = vperm.xlu0 %405, %v262
    %v407 = vpop.permute.xlu0 %406
    %408 = vset.pattern.permute.xlu0 0
    %409 = vperm.xlu0 %408, %v263
    %v410 = vpop.permute.xlu0 %409
    %411 = vset.pattern.permute.xlu0 0
    %412 = vperm.xlu0 %411, %v264
    %v413 = vpop.permute.xlu0 %412
    %414 = vset.pattern.permute.xlu0 0
    %415 = vperm.xlu0 %414, %v265
    %v416 = vpop.permute.xlu0 %415
    %v417 = vlaneseq
    %v418 = vshrl.u32 %v417, 7
    %v419 = vsub.s32 0, %v418
    %v420 = vrot.slane %v266, %v419
    %vm421 = vcmp.eq.s32.totalorder %v371, %v420
    %vm422 = vcmp.eq.s32.totalorder %v374, %v420
    %vm423 = vcmp.eq.s32.totalorder %v377, %v420
    %vm424 = vcmp.eq.s32.totalorder %v380, %v420
    %vm425 = vcmp.eq.s32.totalorder %v383, %v420
    %vm426 = vcmp.eq.s32.totalorder %v386, %v420
    %vm427 = vcmp.eq.s32.totalorder %v389, %v420
    %vm428 = vcmp.eq.s32.totalorder %v392, %v420
    %vm429 = vcmp.eq.s32.totalorder %v395, %v420
    %vm430 = vcmp.eq.s32.totalorder %v398, %v420
    %vm431 = vcmp.eq.s32.totalorder %v401, %v420
    %vm432 = vcmp.eq.s32.totalorder %v404, %v420
    %vm433 = vcmp.eq.s32.totalorder %v407, %v420
    %vm434 = vcmp.eq.s32.totalorder %v410, %v420
    %vm435 = vcmp.eq.s32.totalorder %v413, %v420
    %vm436 = vcmp.eq.s32.totalorder %v416, %v420
    %vm437 = vmand %vm421, %vm337
    %vm438 = vmand %vm422, %vm338
    %vm439 = vmand %vm423, %vm339
    %vm440 = vmand %vm424, %vm340
    %vm441 = vmand %vm425, %vm341
    %vm442 = vmand %vm426, %vm342
    %vm443 = vmand %vm427, %vm343
    %vm444 = vmand %vm428, %vm344
    %vm445 = vmand %vm429, %vm345
    %vm446 = vmand %vm430, %vm346
    %vm447 = vmand %vm431, %vm347
    %vm448 = vmand %vm432, %vm348
    %vm449 = vmand %vm433, %vm349
    %vm450 = vmand %vm434, %vm350
    %vm451 = vmand %vm435, %vm351
    %vm452 = vmand %vm436, %vm352
    %v453 = vld [vmem:[#allocation2] sm:$0xff]
    %v454 = vld [vmem:[#allocation2 + $0x8] sm:$0xff]
    %v455 = vld [vmem:[#allocation2 + $0x10] sm:$0xff]
    %v456 = vld [vmem:[#allocation2 + $0x18] sm:$0xff]
    %v457 = vld [vmem:[#allocation2 + $0x20] sm:$0xff]
    %v458 = vld [vmem:[#allocation2 + $0x28] sm:$0xff]
    %v459 = vld [vmem:[#allocation2 + $0x30] sm:$0xff]
    %v460 = vld [vmem:[#allocation2 + $0x38] sm:$0xff]
    %v461 = vld [vmem:[#allocation2 + $0x40] sm:$0xff]
    %v462 = vld [vmem:[#allocation2 + $0x48] sm:$0xff]
    %v463 = vld [vmem:[#allocation2 + $0x50] sm:$0xff]
    %v464 = vld [vmem:[#allocation2 + $0x58] sm:$0xff]
    %v465 = vld [vmem:[#allocation2 + $0x60] sm:$0xff]
    %v466 = vld [vmem:[#allocation2 + $0x68] sm:$0xff]
    %v467 = vld [vmem:[#allocation2 + $0x70] sm:$0xff]
    %v468 = vld [vmem:[#allocation2 + $0x78] sm:$0xff]
    %469 = vmax.xlane.f32.xlu0 %v353
    %v470 = vpop.xlane.xlu0 %469
    %471 = vmax.xlane.f32.xlu0 %v354
    %v472 = vpop.xlane.xlu0 %471
    %473 = vmax.xlane.f32.xlu0 %v355
    %v474 = vpop.xlane.xlu0 %473
    %475 = vmax.xlane.f32.xlu0 %v356
    %v476 = vpop.xlane.xlu0 %475
    %477 = vmax.xlane.f32.xlu0 %v357
    %v478 = vpop.xlane.xlu0 %477
    %479 = vmax.xlane.f32.xlu0 %v358
    %v480 = vpop.xlane.xlu0 %479
    %481 = vmax.xlane.f32.xlu0 %v359
    %v482 = vpop.xlane.xlu0 %481
    %483 = vmax.xlane.f32.xlu0 %v360
    %v484 = vpop.xlane.xlu0 %483
    %485 = vmax.xlane.f32.xlu0 %v361
    %v486 = vpop.xlane.xlu0 %485
    %487 = vmax.xlane.f32.xlu0 %v362
    %v488 = vpop.xlane.xlu0 %487
    %489 = vmax.xlane.f32.xlu0 %v363
    %v490 = vpop.xlane.xlu0 %489
    %491 = vmax.xlane.f32.xlu0 %v364
    %v492 = vpop.xlane.xlu0 %491
    %493 = vmax.xlane.f32.xlu0 %v365
    %v494 = vpop.xlane.xlu0 %493
    %495 = vmax.xlane.f32.xlu0 %v366
    %v496 = vpop.xlane.xlu0 %495
    %497 = vmax.xlane.f32.xlu0 %v367
    %v498 = vpop.xlane.xlu0 %497
    %499 = vmax.xlane.f32.xlu0 %v368
    %v500 = vpop.xlane.xlu0 %499
    %v501 = vmax.f32 %v453, %v470
    %v502 = vmax.f32 %v454, %v472
    %v503 = vmax.f32 %v455, %v474
    %v504 = vmax.f32 %v456, %v476
    %v505 = vmax.f32 %v457, %v478
    %v506 = vmax.f32 %v458, %v480
    %v507 = vmax.f32 %v459, %v482
    %v508 = vmax.f32 %v460, %v484
    %v509 = vmax.f32 %v461, %v486
    %v510 = vmax.f32 %v462, %v488
    %v511 = vmax.f32 %v463, %v490
    %v512 = vmax.f32 %v464, %v492
    %v513 = vmax.f32 %v465, %v494
    %v514 = vmax.f32 %v466, %v496
    %v515 = vmax.f32 %v467, %v498
    %v516 = vmax.f32 %v468, %v500
    %518 = vset.pattern.permute.xlu0 0
    %519 = vperm.xlu0 %518, %v501
    %v520 = vpop.permute.xlu0 %519
    %523 = vset.pattern.permute.xlu0 0
    %524 = vperm.xlu0 %523, %v502
    %v525 = vpop.permute.xlu0 %524
    %528 = vset.pattern.permute.xlu0 0
    %529 = vperm.xlu0 %528, %v503
    %v530 = vpop.permute.xlu0 %529
    %533 = vset.pattern.permute.xlu0 0
    %534 = vperm.xlu0 %533, %v504
    %v535 = vpop.permute.xlu0 %534
    %538 = vset.pattern.permute.xlu0 0
    %539 = vperm.xlu0 %538, %v505
    %v540 = vpop.permute.xlu0 %539
    %543 = vset.pattern.permute.xlu0 0
    %544 = vperm.xlu0 %543, %v506
    %v545 = vpop.permute.xlu0 %544
    %548 = vset.pattern.permute.xlu0 0
    %549 = vperm.xlu0 %548, %v507
    %v550 = vpop.permute.xlu0 %549
    %553 = vset.pattern.permute.xlu0 0
    %554 = vperm.xlu0 %553, %v508
    %v555 = vpop.permute.xlu0 %554
    %558 = vset.pattern.permute.xlu0 0
    %559 = vperm.xlu0 %558, %v509
    %v560 = vpop.permute.xlu0 %559
    %563 = vset.pattern.permute.xlu0 0
    %564 = vperm.xlu0 %563, %v510
    %v565 = vpop.permute.xlu0 %564
    %568 = vset.pattern.permute.xlu0 0
    %569 = vperm.xlu0 %568, %v511
    %v570 = vpop.permute.xlu0 %569
    %573 = vset.pattern.permute.xlu0 0
    %574 = vperm.xlu0 %573, %v512
    %v575 = vpop.permute.xlu0 %574
    %578 = vset.pattern.permute.xlu0 0
    %579 = vperm.xlu0 %578, %v513
    %v580 = vpop.permute.xlu0 %579
    %583 = vset.pattern.permute.xlu0 0
    %584 = vperm.xlu0 %583, %v514
    %v585 = vpop.permute.xlu0 %584
    %588 = vset.pattern.permute.xlu0 0
    %589 = vperm.xlu0 %588, %v515
    %v590 = vpop.permute.xlu0 %589
    %593 = vset.pattern.permute.xlu0 0
    %594 = vperm.xlu0 %593, %v516
    %v595 = vpop.permute.xlu0 %594
    %v597 = vsub.f32 %v353, %v520
    %v598 = vsub.f32 %v354, %v525
    %v599 = vsub.f32 %v355, %v530
    %v600 = vsub.f32 %v356, %v535
    %v601 = vsub.f32 %v357, %v540
    %v602 = vsub.f32 %v358, %v545
    %v603 = vsub.f32 %v359, %v550
    %v604 = vsub.f32 %v360, %v555
    %v605 = vsub.f32 %v361, %v560
    %v606 = vsub.f32 %v362, %v565
    %v607 = vsub.f32 %v363, %v570
    %v608 = vsub.f32 %v364, %v575
    %v609 = vsub.f32 %v365, %v580
    %v610 = vsub.f32 %v366, %v585
    %v611 = vsub.f32 %v367, %v590
    %v612 = vsub.f32 %v368, %v595
    %v613 = vmul.f32 %v597, 1.442695
    %v614 = vpow.pop %v613
    %v615 = vmul.f32 %v598, 1.442695
    %v616 = vpow.pop %v615
    %v617 = vmul.f32 %v599, 1.442695
    %v618 = vpow.pop %v617
    %v619 = vmul.f32 %v600, 1.442695
    %v620 = vpow.pop %v619
    %v621 = vmul.f32 %v601, 1.442695
    %v622 = vpow.pop %v621
    %v623 = vmul.f32 %v602, 1.442695
    %v624 = vpow.pop %v623
    %v625 = vmul.f32 %v603, 1.442695
    %v626 = vpow.pop %v625
    %v627 = vmul.f32 %v604, 1.442695
    %v628 = vpow.pop %v627
    %v629 = vmul.f32 %v605, 1.442695
    %v630 = vpow.pop %v629
    %v631 = vmul.f32 %v606, 1.442695
    %v632 = vpow.pop %v631
    %v633 = vmul.f32 %v607, 1.442695
    %v634 = vpow.pop %v633
    %v635 = vmul.f32 %v608, 1.442695
    %v636 = vpow.pop %v635
    %v637 = vmul.f32 %v609, 1.442695
    %v638 = vpow.pop %v637
    %v639 = vmul.f32 %v610, 1.442695
    %v640 = vpow.pop %v639
    %v641 = vmul.f32 %v611, 1.442695
    %v642 = vpow.pop %v641
    %v643 = vmul.f32 %v612, 1.442695
    %v644 = vpow.pop %v643
    %v645 = vsel %vm337, %v614, 0.0
    %v646 = vsel %vm338, %v616, 0.0
    %v647 = vsel %vm339, %v618, 0.0
    %v648 = vsel %vm340, %v620, 0.0
    %v649 = vsel %vm341, %v622, 0.0
    %v650 = vsel %vm342, %v624, 0.0
    %v651 = vsel %vm343, %v626, 0.0
    %v652 = vsel %vm344, %v628, 0.0
    %v653 = vsel %vm345, %v630, 0.0
    %v654 = vsel %vm346, %v632, 0.0
    %v655 = vsel %vm347, %v634, 0.0
    %v656 = vsel %vm348, %v636, 0.0
    %v657 = vsel %vm349, %v638, 0.0
    %v658 = vsel %vm350, %v640, 0.0
    %v659 = vsel %vm351, %v642, 0.0
    %v660 = vsel %vm352, %v644, 0.0
    %v661 = vsub.f32 %v453, %v501
    %v662 = vsub.f32 %v454, %v502
    %v663 = vsub.f32 %v455, %v503
    %v664 = vsub.f32 %v456, %v504
    %v665 = vsub.f32 %v457, %v505
    %v666 = vsub.f32 %v458, %v506
    %v667 = vsub.f32 %v459, %v507
    %v668 = vsub.f32 %v460, %v508
    %v669 = vsub.f32 %v461, %v509
    %v670 = vsub.f32 %v462, %v510
    %v671 = vsub.f32 %v463, %v511
    %v672 = vsub.f32 %v464, %v512
    %v673 = vsub.f32 %v465, %v513
    %v674 = vsub.f32 %v466, %v514
    %v675 = vsub.f32 %v467, %v515
    %v676 = vsub.f32 %v468, %v516
    %v677 = vmul.f32 %v661, 1.442695
    %v678 = vpow.pop %v677
    %v679 = vmul.f32 %v662, 1.442695
    %v680 = vpow.pop %v679
    %v681 = vmul.f32 %v663, 1.442695
    %v682 = vpow.pop %v681
    %v683 = vmul.f32 %v664, 1.442695
    %v684 = vpow.pop %v683
    %v685 = vmul.f32 %v665, 1.442695
    %v686 = vpow.pop %v685
    %v687 = vmul.f32 %v666, 1.442695
    %v688 = vpow.pop %v687
    %v689 = vmul.f32 %v667, 1.442695
    %v690 = vpow.pop %v689
    %v691 = vmul.f32 %v668, 1.442695
    %v692 = vpow.pop %v691
    %v693 = vmul.f32 %v669, 1.442695
    %v694 = vpow.pop %v693
    %v695 = vmul.f32 %v670, 1.442695
    %v696 = vpow.pop %v695
    %v697 = vmul.f32 %v671, 1.442695
    %v698 = vpow.pop %v697
    %v699 = vmul.f32 %v672, 1.442695
    %v700 = vpow.pop %v699
    %v701 = vmul.f32 %v673, 1.442695
    %v702 = vpow.pop %v701
    %v703 = vmul.f32 %v674, 1.442695
    %v704 = vpow.pop %v703
    %v705 = vmul.f32 %v675, 1.442695
    %v706 = vpow.pop %v705
    %v707 = vmul.f32 %v676, 1.442695
    %v708 = vpow.pop %v707
    %v709 = vld [vmem:[#allocation3] sm:$0xff]
    %v710 = vld [vmem:[#allocation3 + $0x8] sm:$0xff]
    %v711 = vld [vmem:[#allocation3 + $0x10] sm:$0xff]
    %v712 = vld [vmem:[#allocation3 + $0x18] sm:$0xff]
    %v713 = vld [vmem:[#allocation3 + $0x20] sm:$0xff]
    %v714 = vld [vmem:[#allocation3 + $0x28] sm:$0xff]
    %v715 = vld [vmem:[#allocation3 + $0x30] sm:$0xff]
    %v716 = vld [vmem:[#allocation3 + $0x38] sm:$0xff]
    %v717 = vld [vmem:[#allocation3 + $0x40] sm:$0xff]
    %v718 = vld [vmem:[#allocation3 + $0x48] sm:$0xff]
    %v719 = vld [vmem:[#allocation3 + $0x50] sm:$0xff]
    %v720 = vld [vmem:[#allocation3 + $0x58] sm:$0xff]
    %v721 = vld [vmem:[#allocation3 + $0x60] sm:$0xff]
    %v722 = vld [vmem:[#allocation3 + $0x68] sm:$0xff]
    %v723 = vld [vmem:[#allocation3 + $0x70] sm:$0xff]
    %v724 = vld [vmem:[#allocation3 + $0x78] sm:$0xff]
    %v725 = vmul.f32 %v678, %v709
    %v726 = vmul.f32 %v680, %v710
    %v727 = vmul.f32 %v682, %v711
    %v728 = vmul.f32 %v684, %v712
    %v729 = vmul.f32 %v686, %v713
    %v730 = vmul.f32 %v688, %v714
    %v731 = vmul.f32 %v690, %v715
    %v732 = vmul.f32 %v692, %v716
    %v733 = vmul.f32 %v694, %v717
    %v734 = vmul.f32 %v696, %v718
    %v735 = vmul.f32 %v698, %v719
    %v736 = vmul.f32 %v700, %v720
    %v737 = vmul.f32 %v702, %v721
    %v738 = vmul.f32 %v704, %v722
    %v739 = vmul.f32 %v706, %v723
    %v740 = vmul.f32 %v708, %v724
    %741 = vadd.xlane.f32.xlu0 %v645
    %v742 = vpop.xlane.xlu0 %741
    %743 = vadd.xlane.f32.xlu0 %v646
    %v744 = vpop.xlane.xlu0 %743
    %745 = vadd.xlane.f32.xlu0 %v647
    %v746 = vpop.xlane.xlu0 %745
    %747 = vadd.xlane.f32.xlu0 %v648
    %v748 = vpop.xlane.xlu0 %747
    %749 = vadd.xlane.f32.xlu0 %v649
    %v750 = vpop.xlane.xlu0 %749
    %751 = vadd.xlane.f32.xlu0 %v650
    %v752 = vpop.xlane.xlu0 %751
    %753 = vadd.xlane.f32.xlu0 %v651
    %v754 = vpop.xlane.xlu0 %753
    %755 = vadd.xlane.f32.xlu0 %v652
    %v756 = vpop.xlane.xlu0 %755
    %757 = vadd.xlane.f32.xlu0 %v653
    %v758 = vpop.xlane.xlu0 %757
    %759 = vadd.xlane.f32.xlu0 %v654
    %v760 = vpop.xlane.xlu0 %759
    %761 = vadd.xlane.f32.xlu0 %v655
    %v762 = vpop.xlane.xlu0 %761
    %763 = vadd.xlane.f32.xlu0 %v656
    %v764 = vpop.xlane.xlu0 %763
    %765 = vadd.xlane.f32.xlu0 %v657
    %v766 = vpop.xlane.xlu0 %765
    %767 = vadd.xlane.f32.xlu0 %v658
    %v768 = vpop.xlane.xlu0 %767
    %769 = vadd.xlane.f32.xlu0 %v659
    %v770 = vpop.xlane.xlu0 %769
    %771 = vadd.xlane.f32.xlu0 %v660
    %v772 = vpop.xlane.xlu0 %771
    %v773 = vadd.f32 %v725, %v742
    %v774 = vadd.f32 %v726, %v744
    %v775 = vadd.f32 %v727, %v746
    %v776 = vadd.f32 %v728, %v748
    %v777 = vadd.f32 %v729, %v750
    %v778 = vadd.f32 %v730, %v752
    %v779 = vadd.f32 %v731, %v754
    %v780 = vadd.f32 %v732, %v756
    %v781 = vadd.f32 %v733, %v758
    %v782 = vadd.f32 %v734, %v760
    %v783 = vadd.f32 %v735, %v762
    %v784 = vadd.f32 %v736, %v764
    %v785 = vadd.f32 %v737, %v766
    %v786 = vadd.f32 %v738, %v768
    %v787 = vadd.f32 %v739, %v770
    %v788 = vadd.f32 %v740, %v772
    %vm789 = vcmask 7168
    %790 = vst.msk [vmem:[#allocation3] sm:$0xff] %vm789, %v773
    %791 = vst.msk [vmem:[#allocation3 + $0x8] sm:$0xff] %vm789, %v774
    %792 = vst.msk [vmem:[#allocation3 + $0x10] sm:$0xff] %vm789, %v775
    %793 = vst.msk [vmem:[#allocation3 + $0x18] sm:$0xff] %vm789, %v776
    %794 = vst.msk [vmem:[#allocation3 + $0x20] sm:$0xff] %vm789, %v777
    %795 = vst.msk [vmem:[#allocation3 + $0x28] sm:$0xff] %vm789, %v778
    %796 = vst.msk [vmem:[#allocation3 + $0x30] sm:$0xff] %vm789, %v779
    %797 = vst.msk [vmem:[#allocation3 + $0x38] sm:$0xff] %vm789, %v780
    %798 = vst.msk [vmem:[#allocation3 + $0x40] sm:$0xff] %vm789, %v781
    %799 = vst.msk [vmem:[#allocation3 + $0x48] sm:$0xff] %vm789, %v782
    %800 = vst.msk [vmem:[#allocation3 + $0x50] sm:$0xff] %vm789, %v783
    %801 = vst.msk [vmem:[#allocation3 + $0x58] sm:$0xff] %vm789, %v784
    %802 = vst.msk [vmem:[#allocation3 + $0x60] sm:$0xff] %vm789, %v785
    %803 = vst.msk [vmem:[#allocation3 + $0x68] sm:$0xff] %vm789, %v786
    %804 = vst.msk [vmem:[#allocation3 + $0x70] sm:$0xff] %vm789, %v787
    %805 = vst.msk [vmem:[#allocation3 + $0x78] sm:$0xff] %vm789, %v788
    %806 = vst.msk [vmem:[#allocation2] sm:$0xff] %vm789, %v501
    %807 = vst.msk [vmem:[#allocation2 + $0x8] sm:$0xff] %vm789, %v502
    %808 = vst.msk [vmem:[#allocation2 + $0x10] sm:$0xff] %vm789, %v503
    %809 = vst.msk [vmem:[#allocation2 + $0x18] sm:$0xff] %vm789, %v504
    %810 = vst.msk [vmem:[#allocation2 + $0x20] sm:$0xff] %vm789, %v505
    %811 = vst.msk [vmem:[#allocation2 + $0x28] sm:$0xff] %vm789, %v506
    %812 = vst.msk [vmem:[#allocation2 + $0x30] sm:$0xff] %vm789, %v507
    %813 = vst.msk [vmem:[#allocation2 + $0x38] sm:$0xff] %vm789, %v508
    %814 = vst.msk [vmem:[#allocation2 + $0x40] sm:$0xff] %vm789, %v509
    %815 = vst.msk [vmem:[#allocation2 + $0x48] sm:$0xff] %vm789, %v510
    %816 = vst.msk [vmem:[#allocation2 + $0x50] sm:$0xff] %vm789, %v511
    %817 = vst.msk [vmem:[#allocation2 + $0x58] sm:$0xff] %vm789, %v512
    %818 = vst.msk [vmem:[#allocation2 + $0x60] sm:$0xff] %vm789, %v513
    %819 = vst.msk [vmem:[#allocation2 + $0x68] sm:$0xff] %vm789, %v514
    %820 = vst.msk [vmem:[#allocation2 + $0x70] sm:$0xff] %vm789, %v515
    %821 = vst.msk [vmem:[#allocation2 + $0x78] sm:$0xff] %vm789, %v516
    %v822 = vld [vmem:[#allocation4] sm:$0xff]
    %v823 = vld [vmem:[#allocation4 + $0x8] sm:$0xff]
    %v824 = vld [vmem:[#allocation4 + $0x10] sm:$0xff]
    %v825 = vld [vmem:[#allocation4 + $0x18] sm:$0xff]
    %v826 = vld [vmem:[#allocation4 + $0x20] sm:$0xff]
    %v827 = vld [vmem:[#allocation4 + $0x28] sm:$0xff]
    %v828 = vld [vmem:[#allocation4 + $0x30] sm:$0xff]
    %v829 = vld [vmem:[#allocation4 + $0x38] sm:$0xff]
    %v830 = vld [vmem:[#allocation4 + $0x40] sm:$0xff]
    %v831 = vld [vmem:[#allocation4 + $0x48] sm:$0xff]
    %v832 = vld [vmem:[#allocation4 + $0x50] sm:$0xff]
    %v833 = vld [vmem:[#allocation4 + $0x58] sm:$0xff]
    %v834 = vld [vmem:[#allocation4 + $0x60] sm:$0xff]
    %v835 = vld [vmem:[#allocation4 + $0x68] sm:$0xff]
    %v836 = vld [vmem:[#allocation4 + $0x70] sm:$0xff]
    %v837 = vld [vmem:[#allocation4 + $0x78] sm:$0xff]
    %v838 = vsel %vm437, %v172, 0.0
    %v839 = vsel %vm438, %v177, 0.0
    %v840 = vsel %vm439, %v182, 0.0
    %v841 = vsel %vm440, %v187, 0.0
    %v842 = vsel %vm441, %v192, 0.0
    %v843 = vsel %vm442, %v197, 0.0
    %v844 = vsel %vm443, %v202, 0.0
    %v845 = vsel %vm444, %v207, 0.0
    %v846 = vsel %vm445, %v212, 0.0
    %v847 = vsel %vm446, %v217, 0.0
    %v848 = vsel %vm447, %v222, 0.0
    %v849 = vsel %vm448, %v227, 0.0
    %v850 = vsel %vm449, %v232, 0.0
    %v851 = vsel %vm450, %v237, 0.0
    %v852 = vsel %vm451, %v242, 0.0
    %v853 = vsel %vm452, %v247, 0.0
    %854 = vadd.xlane.f32.xlu0 %v838
    %v855 = vpop.xlane.xlu0 %854
    %856 = vadd.xlane.f32.xlu0 %v839
    %v857 = vpop.xlane.xlu0 %856
    %858 = vadd.xlane.f32.xlu0 %v840
    %v859 = vpop.xlane.xlu0 %858
    %860 = vadd.xlane.f32.xlu0 %v841
    %v861 = vpop.xlane.xlu0 %860
    %862 = vadd.xlane.f32.xlu0 %v842
    %v863 = vpop.xlane.xlu0 %862
    %864 = vadd.xlane.f32.xlu0 %v843
    %v865 = vpop.xlane.xlu0 %864
    %866 = vadd.xlane.f32.xlu0 %v844
    %v867 = vpop.xlane.xlu0 %866
    %868 = vadd.xlane.f32.xlu0 %v845
    %v869 = vpop.xlane.xlu0 %868
    %870 = vadd.xlane.f32.xlu0 %v846
    %v871 = vpop.xlane.xlu0 %870
    %872 = vadd.xlane.f32.xlu0 %v847
    %v873 = vpop.xlane.xlu0 %872
    %874 = vadd.xlane.f32.xlu0 %v848
    %v875 = vpop.xlane.xlu0 %874
    %876 = vadd.xlane.f32.xlu0 %v849
    %v877 = vpop.xlane.xlu0 %876
    %878 = vadd.xlane.f32.xlu0 %v850
    %v879 = vpop.xlane.xlu0 %878
    %880 = vadd.xlane.f32.xlu0 %v851
    %v881 = vpop.xlane.xlu0 %880
    %882 = vadd.xlane.f32.xlu0 %v852
    %v883 = vpop.xlane.xlu0 %882
    %884 = vadd.xlane.f32.xlu0 %v853
    %v885 = vpop.xlane.xlu0 %884
    %v886 = vadd.f32 %v822, %v855
    %v887 = vadd.f32 %v823, %v857
    %v888 = vadd.f32 %v824, %v859
    %v889 = vadd.f32 %v825, %v861
    %v890 = vadd.f32 %v826, %v863
    %v891 = vadd.f32 %v827, %v865
    %v892 = vadd.f32 %v828, %v867
    %v893 = vadd.f32 %v829, %v869
    %v894 = vadd.f32 %v830, %v871
    %v895 = vadd.f32 %v831, %v873
    %v896 = vadd.f32 %v832, %v875
    %v897 = vadd.f32 %v833, %v877
    %v898 = vadd.f32 %v834, %v879
    %v899 = vadd.f32 %v835, %v881
    %v900 = vadd.f32 %v836, %v883
    %v901 = vadd.f32 %v837, %v885
    %902 = vst.msk [vmem:[#allocation4] sm:$0xff] %vm789, %v886
    %903 = vst.msk [vmem:[#allocation4 + $0x8] sm:$0xff] %vm789, %v887
    %904 = vst.msk [vmem:[#allocation4 + $0x10] sm:$0xff] %vm789, %v888
    %905 = vst.msk [vmem:[#allocation4 + $0x18] sm:$0xff] %vm789, %v889
    %906 = vst.msk [vmem:[#allocation4 + $0x20] sm:$0xff] %vm789, %v890
    %907 = vst.msk [vmem:[#allocation4 + $0x28] sm:$0xff] %vm789, %v891
    %908 = vst.msk [vmem:[#allocation4 + $0x30] sm:$0xff] %vm789, %v892
    %909 = vst.msk [vmem:[#allocation4 + $0x38] sm:$0xff] %vm789, %v893
    %910 = vst.msk [vmem:[#allocation4 + $0x40] sm:$0xff] %vm789, %v894
    %911 = vst.msk [vmem:[#allocation4 + $0x48] sm:$0xff] %vm789, %v895
    %912 = vst.msk [vmem:[#allocation4 + $0x50] sm:$0xff] %vm789, %v896
    %913 = vst.msk [vmem:[#allocation4 + $0x58] sm:$0xff] %vm789, %v897
    %914 = vst.msk [vmem:[#allocation4 + $0x60] sm:$0xff] %vm789, %v898
    %915 = vst.msk [vmem:[#allocation4 + $0x68] sm:$0xff] %vm789, %v899
    %916 = vst.msk [vmem:[#allocation4 + $0x70] sm:$0xff] %vm789, %v900
    %917 = vst.msk [vmem:[#allocation4 + $0x78] sm:$0xff] %vm789, %v901
  $region29: #{tpu_custom_call.1} parent=0 // pred_fallthru
    _
  %p918 = pneg %p276
  // Predicated region
  $region30: #{tpu_custom_call.1} parent=0 // pred_check
    _
  $region31: #{tpu_custom_call.1} parent=0 // pred_check_branch
    %920 = sbr.rel (%p276) target = $region33
  $region32: #{tpu_custom_call.1} parent=0 // pred_region
    %921 = vset.pattern.permute.xlu0 0
    %922 = vperm.xlu0 %921, %v250
    %v923 = vpop.permute.xlu0 %922
    %924 = vset.pattern.permute.xlu0 0
    %925 = vperm.xlu0 %924, %v251
    %v926 = vpop.permute.xlu0 %925
    %927 = vset.pattern.permute.xlu0 0
    %928 = vperm.xlu0 %927, %v252
    %v929 = vpop.permute.xlu0 %928
    %930 = vset.pattern.permute.xlu0 0
    %931 = vperm.xlu0 %930, %v253
    %v932 = vpop.permute.xlu0 %931
    %933 = vset.pattern.permute.xlu0 0
    %934 = vperm.xlu0 %933, %v254
    %v935 = vpop.permute.xlu0 %934
    %936 = vset.pattern.permute.xlu0 0
    %937 = vperm.xlu0 %936, %v255
    %v938 = vpop.permute.xlu0 %937
    %939 = vset.pattern.permute.xlu0 0
    %940 = vperm.xlu0 %939, %v256
    %v941 = vpop.permute.xlu0 %940
    %942 = vset.pattern.permute.xlu0 0
    %943 = vperm.xlu0 %942, %v257
    %v944 = vpop.permute.xlu0 %943
    %945 = vset.pattern.permute.xlu0 0
    %946 = vperm.xlu0 %945, %v258
    %v947 = vpop.permute.xlu0 %946
    %948 = vset.pattern.permute.xlu0 0
    %949 = vperm.xlu0 %948, %v259
    %v950 = vpop.permute.xlu0 %949
    %951 = vset.pattern.permute.xlu0 0
    %952 = vperm.xlu0 %951, %v260
    %v953 = vpop.permute.xlu0 %952
    %954 = vset.pattern.permute.xlu0 0
    %955 = vperm.xlu0 %954, %v261
    %v956 = vpop.permute.xlu0 %955
    %957 = vset.pattern.permute.xlu0 0
    %958 = vperm.xlu0 %957, %v262
    %v959 = vpop.permute.xlu0 %958
    %960 = vset.pattern.permute.xlu0 0
    %961 = vperm.xlu0 %960, %v263
    %v962 = vpop.permute.xlu0 %961
    %963 = vset.pattern.permute.xlu0 0
    %964 = vperm.xlu0 %963, %v264
    %v965 = vpop.permute.xlu0 %964
    %966 = vset.pattern.permute.xlu0 0
    %967 = vperm.xlu0 %966, %v265
    %v968 = vpop.permute.xlu0 %967
    %v969 = vlaneseq
    %v970 = vshrl.u32 %v969, 7
    %v971 = vsub.s32 0, %v970
    %v972 = vrot.slane %v266, %v971
    %vm973 = vcmp.eq.s32.totalorder %v923, %v972
    %vm974 = vcmp.eq.s32.totalorder %v926, %v972
    %vm975 = vcmp.eq.s32.totalorder %v929, %v972
    %vm976 = vcmp.eq.s32.totalorder %v932, %v972
    %vm977 = vcmp.eq.s32.totalorder %v935, %v972
    %vm978 = vcmp.eq.s32.totalorder %v938, %v972
    %vm979 = vcmp.eq.s32.totalorder %v941, %v972
    %vm980 = vcmp.eq.s32.totalorder %v944, %v972
    %vm981 = vcmp.eq.s32.totalorder %v947, %v972
    %vm982 = vcmp.eq.s32.totalorder %v950, %v972
    %vm983 = vcmp.eq.s32.totalorder %v953, %v972
    %vm984 = vcmp.eq.s32.totalorder %v956, %v972
    %vm985 = vcmp.eq.s32.totalorder %v959, %v972
    %vm986 = vcmp.eq.s32.totalorder %v962, %v972
    %vm987 = vcmp.eq.s32.totalorder %v965, %v972
    %vm988 = vcmp.eq.s32.totalorder %v968, %v972
    %v989 = vld [vmem:[#allocation2] sm:$0xff]
    %v990 = vld [vmem:[#allocation2 + $0x8] sm:$0xff]
    %v991 = vld [vmem:[#allocation2 + $0x10] sm:$0xff]
    %v992 = vld [vmem:[#allocation2 + $0x18] sm:$0xff]
    %v993 = vld [vmem:[#allocation2 + $0x20] sm:$0xff]
    %v994 = vld [vmem:[#allocation2 + $0x28] sm:$0xff]
    %v995 = vld [vmem:[#allocation2 + $0x30] sm:$0xff]
    %v996 = vld [vmem:[#allocation2 + $0x38] sm:$0xff]
    %v997 = vld [vmem:[#allocation2 + $0x40] sm:$0xff]
    %v998 = vld [vmem:[#allocation2 + $0x48] sm:$0xff]
    %v999 = vld [vmem:[#allocation2 + $0x50] sm:$0xff]
    %v1000 = vld [vmem:[#allocation2 + $0x58] sm:$0xff]
    %v1001 = vld [vmem:[#allocation2 + $0x60] sm:$0xff]
    %v1002 = vld [vmem:[#allocation2 + $0x68] sm:$0xff]
    %v1003 = vld [vmem:[#allocation2 + $0x70] sm:$0xff]
    %v1004 = vld [vmem:[#allocation2 + $0x78] sm:$0xff]
    %1005 = vmax.xlane.f32.xlu0 %v172
    %v1006 = vpop.xlane.xlu0 %1005
    %1007 = vmax.xlane.f32.xlu0 %v177
    %v1008 = vpop.xlane.xlu0 %1007
    %1009 = vmax.xlane.f32.xlu0 %v182
    %v1010 = vpop.xlane.xlu0 %1009
    %1011 = vmax.xlane.f32.xlu0 %v187
    %v1012 = vpop.xlane.xlu0 %1011
    %1013 = vmax.xlane.f32.xlu0 %v192
    %v1014 = vpop.xlane.xlu0 %1013
    %1015 = vmax.xlane.f32.xlu0 %v197
    %v1016 = vpop.xlane.xlu0 %1015
    %1017 = vmax.xlane.f32.xlu0 %v202
    %v1018 = vpop.xlane.xlu0 %1017
    %1019 = vmax.xlane.f32.xlu0 %v207
    %v1020 = vpop.xlane.xlu0 %1019
    %1021 = vmax.xlane.f32.xlu0 %v212
    %v1022 = vpop.xlane.xlu0 %1021
    %1023 = vmax.xlane.f32.xlu0 %v217
    %v1024 = vpop.xlane.xlu0 %1023
    %1025 = vmax.xlane.f32.xlu0 %v222
    %v1026 = vpop.xlane.xlu0 %1025
    %1027 = vmax.xlane.f32.xlu0 %v227
    %v1028 = vpop.xlane.xlu0 %1027
    %1029 = vmax.xlane.f32.xlu0 %v232
    %v1030 = vpop.xlane.xlu0 %1029
    %1031 = vmax.xlane.f32.xlu0 %v237
    %v1032 = vpop.xlane.xlu0 %1031
    %1033 = vmax.xlane.f32.xlu0 %v242
    %v1034 = vpop.xlane.xlu0 %1033
    %1035 = vmax.xlane.f32.xlu0 %v247
    %v1036 = vpop.xlane.xlu0 %1035
    %v1037 = vmax.f32 %v989, %v1006
    %v1038 = vmax.f32 %v990, %v1008
    %v1039 = vmax.f32 %v991, %v1010
    %v1040 = vmax.f32 %v992, %v1012
    %v1041 = vmax.f32 %v993, %v1014
    %v1042 = vmax.f32 %v994, %v1016
    %v1043 = vmax.f32 %v995, %v1018
    %v1044 = vmax.f32 %v996, %v1020
    %v1045 = vmax.f32 %v997, %v1022
    %v1046 = vmax.f32 %v998, %v1024
    %v1047 = vmax.f32 %v999, %v1026
    %v1048 = vmax.f32 %v1000, %v1028
    %v1049 = vmax.f32 %v1001, %v1030
    %v1050 = vmax.f32 %v1002, %v1032
    %v1051 = vmax.f32 %v1003, %v1034
    %v1052 = vmax.f32 %v1004, %v1036
    %1054 = vset.pattern.permute.xlu0 0
    %1055 = vperm.xlu0 %1054, %v1037
    %v1056 = vpop.permute.xlu0 %1055
    %1059 = vset.pattern.permute.xlu0 0
    %1060 = vperm.xlu0 %1059, %v1038
    %v1061 = vpop.permute.xlu0 %1060
    %1064 = vset.pattern.permute.xlu0 0
    %1065 = vperm.xlu0 %1064, %v1039
    %v1066 = vpop.permute.xlu0 %1065
    %1069 = vset.pattern.permute.xlu0 0
    %1070 = vperm.xlu0 %1069, %v1040
    %v1071 = vpop.permute.xlu0 %1070
    %1074 = vset.pattern.permute.xlu0 0
    %1075 = vperm.xlu0 %1074, %v1041
    %v1076 = vpop.permute.xlu0 %1075
    %1079 = vset.pattern.permute.xlu0 0
    %1080 = vperm.xlu0 %1079, %v1042
    %v1081 = vpop.permute.xlu0 %1080
    %1084 = vset.pattern.permute.xlu0 0
    %1085 = vperm.xlu0 %1084, %v1043
    %v1086 = vpop.permute.xlu0 %1085
    %1089 = vset.pattern.permute.xlu0 0
    %1090 = vperm.xlu0 %1089, %v1044
    %v1091 = vpop.permute.xlu0 %1090
    %1094 = vset.pattern.permute.xlu0 0
    %1095 = vperm.xlu0 %1094, %v1045
    %v1096 = vpop.permute.xlu0 %1095
    %1099 = vset.pattern.permute.xlu0 0
    %1100 = vperm.xlu0 %1099, %v1046
    %v1101 = vpop.permute.xlu0 %1100
    %1104 = vset.pattern.permute.xlu0 0
    %1105 = vperm.xlu0 %1104, %v1047
    %v1106 = vpop.permute.xlu0 %1105
    %1109 = vset.pattern.permute.xlu0 0
    %1110 = vperm.xlu0 %1109, %v1048
    %v1111 = vpop.permute.xlu0 %1110
    %1114 = vset.pattern.permute.xlu0 0
    %1115 = vperm.xlu0 %1114, %v1049
    %v1116 = vpop.permute.xlu0 %1115
    %1119 = vset.pattern.permute.xlu0 0
    %1120 = vperm.xlu0 %1119, %v1050
    %v1121 = vpop.permute.xlu0 %1120
    %1124 = vset.pattern.permute.xlu0 0
    %1125 = vperm.xlu0 %1124, %v1051
    %v1126 = vpop.permute.xlu0 %1125
    %1129 = vset.pattern.permute.xlu0 0
    %1130 = vperm.xlu0 %1129, %v1052
    %v1131 = vpop.permute.xlu0 %1130
    %v1133 = vsub.f32 %v172, %v1056
    %v1134 = vsub.f32 %v177, %v1061
    %v1135 = vsub.f32 %v182, %v1066
    %v1136 = vsub.f32 %v187, %v1071
    %v1137 = vsub.f32 %v192, %v1076
    %v1138 = vsub.f32 %v197, %v1081
    %v1139 = vsub.f32 %v202, %v1086
    %v1140 = vsub.f32 %v207, %v1091
    %v1141 = vsub.f32 %v212, %v1096
    %v1142 = vsub.f32 %v217, %v1101
    %v1143 = vsub.f32 %v222, %v1106
    %v1144 = vsub.f32 %v227, %v1111
    %v1145 = vsub.f32 %v232, %v1116
    %v1146 = vsub.f32 %v237, %v1121
    %v1147 = vsub.f32 %v242, %v1126
    %v1148 = vsub.f32 %v247, %v1131
    %v1149 = vmul.f32 %v1133, 1.442695
    %v1150 = vpow.pop %v1149
    %v1151 = vmul.f32 %v1134, 1.442695
    %v1152 = vpow.pop %v1151
    %v1153 = vmul.f32 %v1135, 1.442695
    %v1154 = vpow.pop %v1153
    %v1155 = vmul.f32 %v1136, 1.442695
    %v1156 = vpow.pop %v1155
    %v1157 = vmul.f32 %v1137, 1.442695
    %v1158 = vpow.pop %v1157
    %v1159 = vmul.f32 %v1138, 1.442695
    %v1160 = vpow.pop %v1159
    %v1161 = vmul.f32 %v1139, 1.442695
    %v1162 = vpow.pop %v1161
    %v1163 = vmul.f32 %v1140, 1.442695
    %v1164 = vpow.pop %v1163
    %v1165 = vmul.f32 %v1141, 1.442695
    %v1166 = vpow.pop %v1165
    %v1167 = vmul.f32 %v1142, 1.442695
    %v1168 = vpow.pop %v1167
    %v1169 = vmul.f32 %v1143, 1.442695
    %v1170 = vpow.pop %v1169
    %v1171 = vmul.f32 %v1144, 1.442695
    %v1172 = vpow.pop %v1171
    %v1173 = vmul.f32 %v1145, 1.442695
    %v1174 = vpow.pop %v1173
    %v1175 = vmul.f32 %v1146, 1.442695
    %v1176 = vpow.pop %v1175
    %v1177 = vmul.f32 %v1147, 1.442695
    %v1178 = vpow.pop %v1177
    %v1179 = vmul.f32 %v1148, 1.442695
    %v1180 = vpow.pop %v1179
    %v1181 = vsub.f32 %v989, %v1037
    %v1182 = vsub.f32 %v990, %v1038
    %v1183 = vsub.f32 %v991, %v1039
    %v1184 = vsub.f32 %v992, %v1040
    %v1185 = vsub.f32 %v993, %v1041
    %v1186 = vsub.f32 %v994, %v1042
    %v1187 = vsub.f32 %v995, %v1043
    %v1188 = vsub.f32 %v996, %v1044
    %v1189 = vsub.f32 %v997, %v1045
    %v1190 = vsub.f32 %v998, %v1046
    %v1191 = vsub.f32 %v999, %v1047
    %v1192 = vsub.f32 %v1000, %v1048
    %v1193 = vsub.f32 %v1001, %v1049
    %v1194 = vsub.f32 %v1002, %v1050
    %v1195 = vsub.f32 %v1003, %v1051
    %v1196 = vsub.f32 %v1004, %v1052
    %v1197 = vmul.f32 %v1181, 1.442695
    %v1198 = vpow.pop %v1197
    %v1199 = vmul.f32 %v1182, 1.442695
    %v1200 = vpow.pop %v1199
    %v1201 = vmul.f32 %v1183, 1.442695
    %v1202 = vpow.pop %v1201
    %v1203 = vmul.f32 %v1184, 1.442695
    %v1204 = vpow.pop %v1203
    %v1205 = vmul.f32 %v1185, 1.442695
    %v1206 = vpow.pop %v1205
    %v1207 = vmul.f32 %v1186, 1.442695
    %v1208 = vpow.pop %v1207
    %v1209 = vmul.f32 %v1187, 1.442695
    %v1210 = vpow.pop %v1209
    %v1211 = vmul.f32 %v1188, 1.442695
    %v1212 = vpow.pop %v1211
    %v1213 = vmul.f32 %v1189, 1.442695
    %v1214 = vpow.pop %v1213
    %v1215 = vmul.f32 %v1190, 1.442695
    %v1216 = vpow.pop %v1215
    %v1217 = vmul.f32 %v1191, 1.442695
    %v1218 = vpow.pop %v1217
    %v1219 = vmul.f32 %v1192, 1.442695
    %v1220 = vpow.pop %v1219
    %v1221 = vmul.f32 %v1193, 1.442695
    %v1222 = vpow.pop %v1221
    %v1223 = vmul.f32 %v1194, 1.442695
    %v1224 = vpow.pop %v1223
    %v1225 = vmul.f32 %v1195, 1.442695
    %v1226 = vpow.pop %v1225
    %v1227 = vmul.f32 %v1196, 1.442695
    %v1228 = vpow.pop %v1227
    %v1229 = vld [vmem:[#allocation3] sm:$0xff]
    %v1230 = vld [vmem:[#allocation3 + $0x8] sm:$0xff]
    %v1231 = vld [vmem:[#allocation3 + $0x10] sm:$0xff]
    %v1232 = vld [vmem:[#allocation3 + $0x18] sm:$0xff]
    %v1233 = vld [vmem:[#allocation3 + $0x20] sm:$0xff]
    %v1234 = vld [vmem:[#allocation3 + $0x28] sm:$0xff]
    %v1235 = vld [vmem:[#allocation3 + $0x30] sm:$0xff]
    %v1236 = vld [vmem:[#allocation3 + $0x38] sm:$0xff]
    %v1237 = vld [vmem:[#allocation3 + $0x40] sm:$0xff]
    %v1238 = vld [vmem:[#allocation3 + $0x48] sm:$0xff]
    %v1239 = vld [vmem:[#allocation3 + $0x50] sm:$0xff]
    %v1240 = vld [vmem:[#allocation3 + $0x58] sm:$0xff]
    %v1241 = vld [vmem:[#allocation3 + $0x60] sm:$0xff]
    %v1242 = vld [vmem:[#allocation3 + $0x68] sm:$0xff]
    %v1243 = vld [vmem:[#allocation3 + $0x70] sm:$0xff]
    %v1244 = vld [vmem:[#allocation3 + $0x78] sm:$0xff]
    %v1245 = vmul.f32 %v1198, %v1229
    %v1246 = vmul.f32 %v1200, %v1230
    %v1247 = vmul.f32 %v1202, %v1231
    %v1248 = vmul.f32 %v1204, %v1232
    %v1249 = vmul.f32 %v1206, %v1233
    %v1250 = vmul.f32 %v1208, %v1234
    %v1251 = vmul.f32 %v1210, %v1235
    %v1252 = vmul.f32 %v1212, %v1236
    %v1253 = vmul.f32 %v1214, %v1237
    %v1254 = vmul.f32 %v1216, %v1238
    %v1255 = vmul.f32 %v1218, %v1239
    %v1256 = vmul.f32 %v1220, %v1240
    %v1257 = vmul.f32 %v1222, %v1241
    %v1258 = vmul.f32 %v1224, %v1242
    %v1259 = vmul.f32 %v1226, %v1243
    %v1260 = vmul.f32 %v1228, %v1244
    %1261 = vadd.xlane.f32.xlu0 %v1150
    %v1262 = vpop.xlane.xlu0 %1261
    %1263 = vadd.xlane.f32.xlu0 %v1152
    %v1264 = vpop.xlane.xlu0 %1263
    %1265 = vadd.xlane.f32.xlu0 %v1154
    %v1266 = vpop.xlane.xlu0 %1265
    %1267 = vadd.xlane.f32.xlu0 %v1156
    %v1268 = vpop.xlane.xlu0 %1267
    %1269 = vadd.xlane.f32.xlu0 %v1158
    %v1270 = vpop.xlane.xlu0 %1269
    %1271 = vadd.xlane.f32.xlu0 %v1160
    %v1272 = vpop.xlane.xlu0 %1271
    %1273 = vadd.xlane.f32.xlu0 %v1162
    %v1274 = vpop.xlane.xlu0 %1273
    %1275 = vadd.xlane.f32.xlu0 %v1164
    %v1276 = vpop.xlane.xlu0 %1275
    %1277 = vadd.xlane.f32.xlu0 %v1166
    %v1278 = vpop.xlane.xlu0 %1277
    %1279 = vadd.xlane.f32.xlu0 %v1168
    %v1280 = vpop.xlane.xlu0 %1279
    %1281 = vadd.xlane.f32.xlu0 %v1170
    %v1282 = vpop.xlane.xlu0 %1281
    %1283 = vadd.xlane.f32.xlu0 %v1172
    %v1284 = vpop.xlane.xlu0 %1283
    %1285 = vadd.xlane.f32.xlu0 %v1174
    %v1286 = vpop.xlane.xlu0 %1285
    %1287 = vadd.xlane.f32.xlu0 %v1176
    %v1288 = vpop.xlane.xlu0 %1287
    %1289 = vadd.xlane.f32.xlu0 %v1178
    %v1290 = vpop.xlane.xlu0 %1289
    %1291 = vadd.xlane.f32.xlu0 %v1180
    %v1292 = vpop.xlane.xlu0 %1291
    %v1293 = vadd.f32 %v1245, %v1262
    %v1294 = vadd.f32 %v1246, %v1264
    %v1295 = vadd.f32 %v1247, %v1266
    %v1296 = vadd.f32 %v1248, %v1268
    %v1297 = vadd.f32 %v1249, %v1270
    %v1298 = vadd.f32 %v1250, %v1272
    %v1299 = vadd.f32 %v1251, %v1274
    %v1300 = vadd.f32 %v1252, %v1276
    %v1301 = vadd.f32 %v1253, %v1278
    %v1302 = vadd.f32 %v1254, %v1280
    %v1303 = vadd.f32 %v1255, %v1282
    %v1304 = vadd.f32 %v1256, %v1284
    %v1305 = vadd.f32 %v1257, %v1286
    %v1306 = vadd.f32 %v1258, %v1288
    %v1307 = vadd.f32 %v1259, %v1290
    %v1308 = vadd.f32 %v1260, %v1292
    %vm1309 = vcmask 7168
    %1310 = vst.msk [vmem:[#allocation3] sm:$0xff] %vm1309, %v1293
    %1311 = vst.msk [vmem:[#allocation3 + $0x8] sm:$0xff] %vm1309, %v1294
    %1312 = vst.msk [vmem:[#allocation3 + $0x10] sm:$0xff] %vm1309, %v1295
    %1313 = vst.msk [vmem:[#allocation3 + $0x18] sm:$0xff] %vm1309, %v1296
    %1314 = vst.msk [vmem:[#allocation3 + $0x20] sm:$0xff] %vm1309, %v1297
    %1315 = vst.msk [vmem:[#allocation3 + $0x28] sm:$0xff] %vm1309, %v1298
    %1316 = vst.msk [vmem:[#allocation3 + $0x30] sm:$0xff] %vm1309, %v1299
    %1317 = vst.msk [vmem:[#allocation3 + $0x38] sm:$0xff] %vm1309, %v1300
    %1318 = vst.msk [vmem:[#allocation3 + $0x40] sm:$0xff] %vm1309, %v1301
    %1319 = vst.msk [vmem:[#allocation3 + $0x48] sm:$0xff] %vm1309, %v1302
    %1320 = vst.msk [vmem:[#allocation3 + $0x50] sm:$0xff] %vm1309, %v1303
    %1321 = vst.msk [vmem:[#allocation3 + $0x58] sm:$0xff] %vm1309, %v1304
    %1322 = vst.msk [vmem:[#allocation3 + $0x60] sm:$0xff] %vm1309, %v1305
    %1323 = vst.msk [vmem:[#allocation3 + $0x68] sm:$0xff] %vm1309, %v1306
    %1324 = vst.msk [vmem:[#allocation3 + $0x70] sm:$0xff] %vm1309, %v1307
    %1325 = vst.msk [vmem:[#allocation3 + $0x78] sm:$0xff] %vm1309, %v1308
    %1326 = vst.msk [vmem:[#allocation2] sm:$0xff] %vm1309, %v1037
    %1327 = vst.msk [vmem:[#allocation2 + $0x8] sm:$0xff] %vm1309, %v1038
    %1328 = vst.msk [vmem:[#allocation2 + $0x10] sm:$0xff] %vm1309, %v1039
    %1329 = vst.msk [vmem:[#allocation2 + $0x18] sm:$0xff] %vm1309, %v1040
    %1330 = vst.msk [vmem:[#allocation2 + $0x20] sm:$0xff] %vm1309, %v1041
    %1331 = vst.msk [vmem:[#allocation2 + $0x28] sm:$0xff] %vm1309, %v1042
    %1332 = vst.msk [vmem:[#allocation2 + $0x30] sm:$0xff] %vm1309, %v1043
    %1333 = vst.msk [vmem:[#allocation2 + $0x38] sm:$0xff] %vm1309, %v1044
    %1334 = vst.msk [vmem:[#allocation2 + $0x40] sm:$0xff] %vm1309, %v1045
    %1335 = vst.msk [vmem:[#allocation2 + $0x48] sm:$0xff] %vm1309, %v1046
    %1336 = vst.msk [vmem:[#allocation2 + $0x50] sm:$0xff] %vm1309, %v1047
    %1337 = vst.msk [vmem:[#allocation2 + $0x58] sm:$0xff] %vm1309, %v1048
    %1338 = vst.msk [vmem:[#allocation2 + $0x60] sm:$0xff] %vm1309, %v1049
    %1339 = vst.msk [vmem:[#allocation2 + $0x68] sm:$0xff] %vm1309, %v1050
    %1340 = vst.msk [vmem:[#allocation2 + $0x70] sm:$0xff] %vm1309, %v1051
    %1341 = vst.msk [vmem:[#allocation2 + $0x78] sm:$0xff] %vm1309, %v1052
    %v1342 = vld [vmem:[#allocation4] sm:$0xff]
    %v1343 = vld [vmem:[#allocation4 + $0x8] sm:$0xff]
    %v1344 = vld [vmem:[#allocation4 + $0x10] sm:$0xff]
    %v1345 = vld [vmem:[#allocation4 + $0x18] sm:$0xff]
    %v1346 = vld [vmem:[#allocation4 + $0x20] sm:$0xff]
    %v1347 = vld [vmem:[#allocation4 + $0x28] sm:$0xff]
    %v1348 = vld [vmem:[#allocation4 + $0x30] sm:$0xff]
    %v1349 = vld [vmem:[#allocation4 + $0x38] sm:$0xff]
    %v1350 = vld [vmem:[#allocation4 + $0x40] sm:$0xff]
    %v1351 = vld [vmem:[#allocation4 + $0x48] sm:$0xff]
    %v1352 = vld [vmem:[#allocation4 + $0x50] sm:$0xff]
    %v1353 = vld [vmem:[#allocation4 + $0x58] sm:$0xff]
    %v1354 = vld [vmem:[#allocation4 + $0x60] sm:$0xff]
    %v1355 = vld [vmem:[#allocation4 + $0x68] sm:$0xff]
    %v1356 = vld [vmem:[#allocation4 + $0x70] sm:$0xff]
    %v1357 = vld [vmem:[#allocation4 + $0x78] sm:$0xff]
    %v1358 = vsel %vm973, %v172, 0.0
    %v1359 = vsel %vm974, %v177, 0.0
    %v1360 = vsel %vm975, %v182, 0.0
    %v1361 = vsel %vm976, %v187, 0.0
    %v1362 = vsel %vm977, %v192, 0.0
    %v1363 = vsel %vm978, %v197, 0.0
    %v1364 = vsel %vm979, %v202, 0.0
    %v1365 = vsel %vm980, %v207, 0.0
    %v1366 = vsel %vm981, %v212, 0.0
    %v1367 = vsel %vm982, %v217, 0.0
    %v1368 = vsel %vm983, %v222, 0.0
    %v1369 = vsel %vm984, %v227, 0.0
    %v1370 = vsel %vm985, %v232, 0.0
    %v1371 = vsel %vm986, %v237, 0.0
    %v1372 = vsel %vm987, %v242, 0.0
    %v1373 = vsel %vm988, %v247, 0.0
    %1374 = vadd.xlane.f32.xlu0 %v1358
    %v1375 = vpop.xlane.xlu0 %1374
    %1376 = vadd.xlane.f32.xlu0 %v1359
    %v1377 = vpop.xlane.xlu0 %1376
    %1378 = vadd.xlane.f32.xlu0 %v1360
    %v1379 = vpop.xlane.xlu0 %1378
    %1380 = vadd.xlane.f32.xlu0 %v1361
    %v1381 = vpop.xlane.xlu0 %1380
    %1382 = vadd.xlane.f32.xlu0 %v1362
    %v1383 = vpop.xlane.xlu0 %1382
    %1384 = vadd.xlane.f32.xlu0 %v1363
    %v1385 = vpop.xlane.xlu0 %1384
    %1386 = vadd.xlane.f32.xlu0 %v1364
    %v1387 = vpop.xlane.xlu0 %1386
    %1388 = vadd.xlane.f32.xlu0 %v1365
    %v1389 = vpop.xlane.xlu0 %1388
    %1390 = vadd.xlane.f32.xlu0 %v1366
    %v1391 = vpop.xlane.xlu0 %1390
    %1392 = vadd.xlane.f32.xlu0 %v1367
    %v1393 = vpop.xlane.xlu0 %1392
    %1394 = vadd.xlane.f32.xlu0 %v1368
    %v1395 = vpop.xlane.xlu0 %1394
    %1396 = vadd.xlane.f32.xlu0 %v1369
    %v1397 = vpop.xlane.xlu0 %1396
    %1398 = vadd.xlane.f32.xlu0 %v1370
    %v1399 = vpop.xlane.xlu0 %1398
    %1400 = vadd.xlane.f32.xlu0 %v1371
    %v1401 = vpop.xlane.xlu0 %1400
    %1402 = vadd.xlane.f32.xlu0 %v1372
    %v1403 = vpop.xlane.xlu0 %1402
    %1404 = vadd.xlane.f32.xlu0 %v1373
    %v1405 = vpop.xlane.xlu0 %1404
    %v1406 = vadd.f32 %v1342, %v1375
    %v1407 = vadd.f32 %v1343, %v1377
    %v1408 = vadd.f32 %v1344, %v1379
    %v1409 = vadd.f32 %v1345, %v1381
    %v1410 = vadd.f32 %v1346, %v1383
    %v1411 = vadd.f32 %v1347, %v1385
    %v1412 = vadd.f32 %v1348, %v1387
    %v1413 = vadd.f32 %v1349, %v1389
    %v1414 = vadd.f32 %v1350, %v1391
    %v1415 = vadd.f32 %v1351, %v1393
    %v1416 = vadd.f32 %v1352, %v1395
    %v1417 = vadd.f32 %v1353, %v1397
    %v1418 = vadd.f32 %v1354, %v1399
    %v1419 = vadd.f32 %v1355, %v1401
    %v1420 = vadd.f32 %v1356, %v1403
    %v1421 = vadd.f32 %v1357, %v1405
    %1422 = vst.msk [vmem:[#allocation4] sm:$0xff] %vm1309, %v1406
    %1423 = vst.msk [vmem:[#allocation4 + $0x8] sm:$0xff] %vm1309, %v1407
    %1424 = vst.msk [vmem:[#allocation4 + $0x10] sm:$0xff] %vm1309, %v1408
    %1425 = vst.msk [vmem:[#allocation4 + $0x18] sm:$0xff] %vm1309, %v1409
    %1426 = vst.msk [vmem:[#allocation4 + $0x20] sm:$0xff] %vm1309, %v1410
    %1427 = vst.msk [vmem:[#allocation4 + $0x28] sm:$0xff] %vm1309, %v1411
    %1428 = vst.msk [vmem:[#allocation4 + $0x30] sm:$0xff] %vm1309, %v1412
    %1429 = vst.msk [vmem:[#allocation4 + $0x38] sm:$0xff] %vm1309, %v1413
    %1430 = vst.msk [vmem:[#allocation4 + $0x40] sm:$0xff] %vm1309, %v1414
    %1431 = vst.msk [vmem:[#allocation4 + $0x48] sm:$0xff] %vm1309, %v1415
    %1432 = vst.msk [vmem:[#allocation4 + $0x50] sm:$0xff] %vm1309, %v1416
    %1433 = vst.msk [vmem:[#allocation4 + $0x58] sm:$0xff] %vm1309, %v1417
    %1434 = vst.msk [vmem:[#allocation4 + $0x60] sm:$0xff] %vm1309, %v1418
    %1435 = vst.msk [vmem:[#allocation4 + $0x68] sm:$0xff] %vm1309, %v1419
    %1436 = vst.msk [vmem:[#allocation4 + $0x70] sm:$0xff] %vm1309, %v1420
    %1437 = vst.msk [vmem:[#allocation4 + $0x78] sm:$0xff] %vm1309, %v1421
  $region33: #{tpu_custom_call.1} parent=0 // pred_fallthru
    _
  // Predicated region
  $region34: #{tpu_custom_call.1} parent=0 // pred_check
    %p1438 = pneg %p20
  $region35: #{tpu_custom_call.1} parent=0 // pred_check_branch
    %1440 = sbr.rel (%p1438) target = $region37
  $region36: #{tpu_custom_call.1} parent=0 // pred_region
    %v1441 = vlaneseq
    %v1442 = vshrl.u32 %v1441, 7
    %v1443 = vadd.s32 %v1442, 8
    %v1444 = vadd.s32 %v1442, 16
    %v1445 = vadd.s32 %v1442, 24
    %v1446 = vadd.s32 %v1442, 32
    %v1447 = vadd.s32 %v1442, 40
    %v1448 = vadd.s32 %v1442, 48
    %v1449 = vadd.s32 %v1442, 56
    %v1450 = vadd.s32 %v1442, 64
    %v1451 = vadd.s32 %v1442, 72
    %v1452 = vadd.s32 %v1442, 80
    %v1453 = vadd.s32 %v1442, 88
    %v1454 = vadd.s32 %v1442, 96
    %v1455 = vadd.s32 %v1442, 104
    %v1456 = vadd.s32 %v1442, 112
    %v1457 = vadd.s32 %v1442, 120
    %v1458 = vstv %s267
    %v1459 = vadd.s32 %v1458, %v1442
    %v1460 = vadd.s32 %v1458, %v1443
    %v1461 = vadd.s32 %v1458, %v1444
    %v1462 = vadd.s32 %v1458, %v1445
    %v1463 = vadd.s32 %v1458, %v1446
    %v1464 = vadd.s32 %v1458, %v1447
    %v1465 = vadd.s32 %v1458, %v1448
    %v1466 = vadd.s32 %v1458, %v1449
    %v1467 = vadd.s32 %v1458, %v1450
    %v1468 = vadd.s32 %v1458, %v1451
    %v1469 = vadd.s32 %v1458, %v1452
    %v1470 = vadd.s32 %v1458, %v1453
    %v1471 = vadd.s32 %v1458, %v1454
    %v1472 = vadd.s32 %v1458, %v1455
    %v1473 = vadd.s32 %v1458, %v1456
    %v1474 = vadd.s32 %v1458, %v1457
    %vm1475 = vcmp.lt.s32.totalorder %v1459, 8
    %vm1476 = vcmp.lt.s32.totalorder %v1460, 8
    %vm1477 = vcmp.lt.s32.totalorder %v1461, 8
    %vm1478 = vcmp.lt.s32.totalorder %v1462, 8
    %vm1479 = vcmp.lt.s32.totalorder %v1463, 8
    %vm1480 = vcmp.lt.s32.totalorder %v1464, 8
    %vm1481 = vcmp.lt.s32.totalorder %v1465, 8
    %vm1482 = vcmp.lt.s32.totalorder %v1466, 8
    %vm1483 = vcmp.lt.s32.totalorder %v1467, 8
    %vm1484 = vcmp.lt.s32.totalorder %v1468, 8
    %vm1485 = vcmp.lt.s32.totalorder %v1469, 8
    %vm1486 = vcmp.lt.s32.totalorder %v1470, 8
    %vm1487 = vcmp.lt.s32.totalorder %v1471, 8
    %vm1488 = vcmp.lt.s32.totalorder %v1472, 8
    %vm1489 = vcmp.lt.s32.totalorder %v1473, 8
    %vm1490 = vcmp.lt.s32.totalorder %v1474, 8
    %v1491 = vld [vmem:[#allocation2] sm:$0xff]
    %v1492 = vld [vmem:[#allocation2 + $0x8] sm:$0xff]
    %v1493 = vld [vmem:[#allocation2 + $0x10] sm:$0xff]
    %v1494 = vld [vmem:[#allocation2 + $0x18] sm:$0xff]
    %v1495 = vld [vmem:[#allocation2 + $0x20] sm:$0xff]
    %v1496 = vld [vmem:[#allocation2 + $0x28] sm:$0xff]
    %v1497 = vld [vmem:[#allocation2 + $0x30] sm:$0xff]
    %v1498 = vld [vmem:[#allocation2 + $0x38] sm:$0xff]
    %v1499 = vld [vmem:[#allocation2 + $0x40] sm:$0xff]
    %v1500 = vld [vmem:[#allocation2 + $0x48] sm:$0xff]
    %v1501 = vld [vmem:[#allocation2 + $0x50] sm:$0xff]
    %v1502 = vld [vmem:[#allocation2 + $0x58] sm:$0xff]
    %v1503 = vld [vmem:[#allocation2 + $0x60] sm:$0xff]
    %v1504 = vld [vmem:[#allocation2 + $0x68] sm:$0xff]
    %v1505 = vld [vmem:[#allocation2 + $0x70] sm:$0xff]
    %v1506 = vld [vmem:[#allocation2 + $0x78] sm:$0xff]
    %v1507 = vld [vmem:[#allocation3] sm:$0xff]
    %v1508 = vld [vmem:[#allocation3 + $0x8] sm:$0xff]
    %v1509 = vld [vmem:[#allocation3 + $0x10] sm:$0xff]
    %v1510 = vld [vmem:[#allocation3 + $0x18] sm:$0xff]
    %v1511 = vld [vmem:[#allocation3 + $0x20] sm:$0xff]
    %v1512 = vld [vmem:[#allocation3 + $0x28] sm:$0xff]
    %v1513 = vld [vmem:[#allocation3 + $0x30] sm:$0xff]
    %v1514 = vld [vmem:[#allocation3 + $0x38] sm:$0xff]
    %v1515 = vld [vmem:[#allocation3 + $0x40] sm:$0xff]
    %v1516 = vld [vmem:[#allocation3 + $0x48] sm:$0xff]
    %v1517 = vld [vmem:[#allocation3 + $0x50] sm:$0xff]
    %v1518 = vld [vmem:[#allocation3 + $0x58] sm:$0xff]
    %v1519 = vld [vmem:[#allocation3 + $0x60] sm:$0xff]
    %v1520 = vld [vmem:[#allocation3 + $0x68] sm:$0xff]
    %v1521 = vld [vmem:[#allocation3 + $0x70] sm:$0xff]
    %v1522 = vld [vmem:[#allocation3 + $0x78] sm:$0xff]
    %v1523 = vlog2.pop %v1507
    %v1524 = vmul.f32 %v1523, 0.6931472
    %v1525 = vlog2.pop %v1508
    %v1526 = vmul.f32 %v1525, 0.6931472
    %v1527 = vlog2.pop %v1509
    %v1528 = vmul.f32 %v1527, 0.6931472
    %v1529 = vlog2.pop %v1510
    %v1530 = vmul.f32 %v1529, 0.6931472
    %v1531 = vlog2.pop %v1511
    %v1532 = vmul.f32 %v1531, 0.6931472
    %v1533 = vlog2.pop %v1512
    %v1534 = vmul.f32 %v1533, 0.6931472
    %v1535 = vlog2.pop %v1513
    %v1536 = vmul.f32 %v1535, 0.6931472
    %v1537 = vlog2.pop %v1514
    %v1538 = vmul.f32 %v1537, 0.6931472
    %v1539 = vlog2.pop %v1515
    %v1540 = vmul.f32 %v1539, 0.6931472
    %v1541 = vlog2.pop %v1516
    %v1542 = vmul.f32 %v1541, 0.6931472
    %v1543 = vlog2.pop %v1517
    %v1544 = vmul.f32 %v1543, 0.6931472
    %v1545 = vlog2.pop %v1518
    %v1546 = vmul.f32 %v1545, 0.6931472
    %v1547 = vlog2.pop %v1519
    %v1548 = vmul.f32 %v1547, 0.6931472
    %v1549 = vlog2.pop %v1520
    %v1550 = vmul.f32 %v1549, 0.6931472
    %v1551 = vlog2.pop %v1521
    %v1552 = vmul.f32 %v1551, 0.6931472
    %v1553 = vlog2.pop %v1522
    %v1554 = vmul.f32 %v1553, 0.6931472
    %v1555 = vadd.f32 %v1491, %v1524
    %v1556 = vadd.f32 %v1492, %v1526
    %v1557 = vadd.f32 %v1493, %v1528
    %v1558 = vadd.f32 %v1494, %v1530
    %v1559 = vadd.f32 %v1495, %v1532
    %v1560 = vadd.f32 %v1496, %v1534
    %v1561 = vadd.f32 %v1497, %v1536
    %v1562 = vadd.f32 %v1498, %v1538
    %v1563 = vadd.f32 %v1499, %v1540
    %v1564 = vadd.f32 %v1500, %v1542
    %v1565 = vadd.f32 %v1501, %v1544
    %v1566 = vadd.f32 %v1502, %v1546
    %v1567 = vadd.f32 %v1503, %v1548
    %v1568 = vadd.f32 %v1504, %v1550
    %v1569 = vadd.f32 %v1505, %v1552
    %v1570 = vadd.f32 %v1506, %v1554
    %v1571 = vld [vmem:[#allocation4] sm:$0xff]
    %v1572 = vld [vmem:[#allocation4 + $0x8] sm:$0xff]
    %v1573 = vld [vmem:[#allocation4 + $0x10] sm:$0xff]
    %v1574 = vld [vmem:[#allocation4 + $0x18] sm:$0xff]
    %v1575 = vld [vmem:[#allocation4 + $0x20] sm:$0xff]
    %v1576 = vld [vmem:[#allocation4 + $0x28] sm:$0xff]
    %v1577 = vld [vmem:[#allocation4 + $0x30] sm:$0xff]
    %v1578 = vld [vmem:[#allocation4 + $0x38] sm:$0xff]
    %v1579 = vld [vmem:[#allocation4 + $0x40] sm:$0xff]
    %v1580 = vld [vmem:[#allocation4 + $0x48] sm:$0xff]
    %v1581 = vld [vmem:[#allocation4 + $0x50] sm:$0xff]
    %v1582 = vld [vmem:[#allocation4 + $0x58] sm:$0xff]
    %v1583 = vld [vmem:[#allocation4 + $0x60] sm:$0xff]
    %v1584 = vld [vmem:[#allocation4 + $0x68] sm:$0xff]
    %v1585 = vld [vmem:[#allocation4 + $0x70] sm:$0xff]
    %v1586 = vld [vmem:[#allocation4 + $0x78] sm:$0xff]
    %v1587 = vld [vmem:[%s4] sm:$0xff]
    %v1588 = vld [vmem:[%s4 + $0x8] sm:$0xff]
    %v1589 = vld [vmem:[%s4 + $0x10] sm:$0xff]
    %v1590 = vld [vmem:[%s4 + $0x18] sm:$0xff]
    %v1591 = vld [vmem:[%s4 + $0x20] sm:$0xff]
    %v1592 = vld [vmem:[%s4 + $0x28] sm:$0xff]
    %v1593 = vld [vmem:[%s4 + $0x30] sm:$0xff]
    %v1594 = vld [vmem:[%s4 + $0x38] sm:$0xff]
    %v1595 = vld [vmem:[%s4 + $0x40] sm:$0xff]
    %v1596 = vld [vmem:[%s4 + $0x48] sm:$0xff]
    %v1597 = vld [vmem:[%s4 + $0x50] sm:$0xff]
    %v1598 = vld [vmem:[%s4 + $0x58] sm:$0xff]
    %v1599 = vld [vmem:[%s4 + $0x60] sm:$0xff]
    %v1600 = vld [vmem:[%s4 + $0x68] sm:$0xff]
    %v1601 = vld [vmem:[%s4 + $0x70] sm:$0xff]
    %v1602 = vld [vmem:[%s4 + $0x78] sm:$0xff]
    %v1603 = vmul.f32 %v1571, %v1587
    %v1604 = vmul.f32 %v1572, %v1588
    %v1605 = vmul.f32 %v1573, %v1589
    %v1606 = vmul.f32 %v1574, %v1590
    %v1607 = vmul.f32 %v1575, %v1591
    %v1608 = vmul.f32 %v1576, %v1592
    %v1609 = vmul.f32 %v1577, %v1593
    %v1610 = vmul.f32 %v1578, %v1594
    %v1611 = vmul.f32 %v1579, %v1595
    %v1612 = vmul.f32 %v1580, %v1596
    %v1613 = vmul.f32 %v1581, %v1597
    %v1614 = vmul.f32 %v1582, %v1598
    %v1615 = vmul.f32 %v1583, %v1599
    %v1616 = vmul.f32 %v1584, %v1600
    %v1617 = vmul.f32 %v1585, %v1601
    %v1618 = vmul.f32 %v1586, %v1602
    %v1619 = vsub.f32 %v1603, %v1555
    %v1620 = vsub.f32 %v1604, %v1556
    %v1621 = vsub.f32 %v1605, %v1557
    %v1622 = vsub.f32 %v1606, %v1558
    %v1623 = vsub.f32 %v1607, %v1559
    %v1624 = vsub.f32 %v1608, %v1560
    %v1625 = vsub.f32 %v1609, %v1561
    %v1626 = vsub.f32 %v1610, %v1562
    %v1627 = vsub.f32 %v1611, %v1563
    %v1628 = vsub.f32 %v1612, %v1564
    %v1629 = vsub.f32 %v1613, %v1565
    %v1630 = vsub.f32 %v1614, %v1566
    %v1631 = vsub.f32 %v1615, %v1567
    %v1632 = vsub.f32 %v1616, %v1568
    %v1633 = vsub.f32 %v1617, %v1569
    %v1634 = vsub.f32 %v1618, %v1570
    %v1635 = vmul.f32 %v1619, -1.0
    %v1636 = vmul.f32 %v1620, -1.0
    %v1637 = vmul.f32 %v1621, -1.0
    %v1638 = vmul.f32 %v1622, -1.0
    %v1639 = vmul.f32 %v1623, -1.0
    %v1640 = vmul.f32 %v1624, -1.0
    %v1641 = vmul.f32 %v1625, -1.0
    %v1642 = vmul.f32 %v1626, -1.0
    %v1643 = vmul.f32 %v1627, -1.0
    %v1644 = vmul.f32 %v1628, -1.0
    %v1645 = vmul.f32 %v1629, -1.0
    %v1646 = vmul.f32 %v1630, -1.0
    %v1647 = vmul.f32 %v1631, -1.0
    %v1648 = vmul.f32 %v1632, -1.0
    %v1649 = vmul.f32 %v1633, -1.0
    %v1650 = vmul.f32 %v1634, -1.0
    %v1651 = vsel %vm1475, %v1635, 0.0
    %v1652 = vsel %vm1476, %v1636, 0.0
    %v1653 = vsel %vm1477, %v1637, 0.0
    %v1654 = vsel %vm1478, %v1638, 0.0
    %v1655 = vsel %vm1479, %v1639, 0.0
    %v1656 = vsel %vm1480, %v1640, 0.0
    %v1657 = vsel %vm1481, %v1641, 0.0
    %v1658 = vsel %vm1482, %v1642, 0.0
    %v1659 = vsel %vm1483, %v1643, 0.0
    %v1660 = vsel %vm1484, %v1644, 0.0
    %v1661 = vsel %vm1485, %v1645, 0.0
    %v1662 = vsel %vm1486, %v1646, 0.0
    %v1663 = vsel %vm1487, %v1647, 0.0
    %v1664 = vsel %vm1488, %v1648, 0.0
    %v1665 = vsel %vm1489, %v1649, 0.0
    %v1666 = vsel %vm1490, %v1650, 0.0
    %vm1667 = vcmask 7168
    %1668 = vst.msk [vmem:[%s5] sm:$0xff] %vm1667, %v1651
    %1669 = vst.msk [vmem:[%s5 + $0x8] sm:$0xff] %vm1667, %v1652
    %1670 = vst.msk [vmem:[%s5 + $0x10] sm:$0xff] %vm1667, %v1653
    %1671 = vst.msk [vmem:[%s5 + $0x18] sm:$0xff] %vm1667, %v1654
    %1672 = vst.msk [vmem:[%s5 + $0x20] sm:$0xff] %vm1667, %v1655
    %1673 = vst.msk [vmem:[%s5 + $0x28] sm:$0xff] %vm1667, %v1656
    %1674 = vst.msk [vmem:[%s5 + $0x30] sm:$0xff] %vm1667, %v1657
    %1675 = vst.msk [vmem:[%s5 + $0x38] sm:$0xff] %vm1667, %v1658
    %1676 = vst.msk [vmem:[%s5 + $0x40] sm:$0xff] %vm1667, %v1659
    %1677 = vst.msk [vmem:[%s5 + $0x48] sm:$0xff] %vm1667, %v1660
    %1678 = vst.msk [vmem:[%s5 + $0x50] sm:$0xff] %vm1667, %v1661
    %1679 = vst.msk [vmem:[%s5 + $0x58] sm:$0xff] %vm1667, %v1662
    %1680 = vst.msk [vmem:[%s5 + $0x60] sm:$0xff] %vm1667, %v1663
    %1681 = vst.msk [vmem:[%s5 + $0x68] sm:$0xff] %vm1667, %v1664
    %1682 = vst.msk [vmem:[%s5 + $0x70] sm:$0xff] %vm1667, %v1665
    %1683 = vst.msk [vmem:[%s5 + $0x78] sm:$0xff] %vm1667, %v1666
  $region37: #{tpu_custom_call.1} parent=0 // pred_fallthru
    _
  // Predicated region
  $region38: #{tpu_custom_call.1} parent=0 // pred_check
    _
  $region39: #{tpu_custom_call.1} parent=0 // pred_check_branch
    %1685 = sbr.rel (0) target = $region41
  $region40: #{tpu_custom_call.1} parent=0 // pred_region
    _
  $region41: #{tpu_custom_call.1} parent=0 // pred_fallthru
    _
  // Predicated region
  $region42: #{tpu_custom_call.1} parent=0 // pred_check
    _
  $region43: #{tpu_custom_call.1} parent=0 // pred_check_branch
    %1687 = sbr.rel (0) target = $region45
  $region44: #{tpu_custom_call.1} parent=0 // pred_region
    _
  $region45: #{tpu_custom_call.1} parent=0 // pred_fallthru
    _

</llo_original>
